<compile_context>
chip_gen: v7x
topology: tpu7x:2x2x1
jax: 0.10.0
libtpu: 0.0.40
codegen_flags: <defaults>
</compile_context>

<pallas_src>
import numpy as np
import jax
import jax.numpy as jnp
from jax import lax
from jax.experimental import pallas as pl
from jax.experimental.pallas import tpu as pltpu

# Experiment11 hyper-parameters
NFMS = [150, 150, 150]
KS = [4, 4, 5]
KMAX = max(KS)


def _round_up(x, m):
    return (x + m - 1) // m * m


def make_kernel(Bt, T, K_pad, n_pad):
    """Kernel for one batch tile.

    Inputs (VMEM blocks):
      x_ref    : (Bt, T, K_pad)  wrapper-side im2col slab (static||ns taps)
      w_ref    : (K_pad, n_pad)  fused conv weight for all 3 convs
      b_ref    : (1, n_pad)      fused conv bias
      mask_ref : (T, n_pad)      0/1 f32 time-validity mask (grid-invariant)
      fcw_ref  : (n_pad, c_pad)  fc weight (rows/cols zero-padded)
      fcb_ref  : (1, c_pad)      fc bias
      out_ref  : (Bt, c_pad)     logits (lane-dense, padded classes)
    """

    def kernel(x_ref, w_ref, b_ref, mask_ref, fcw_ref, fcb_ref, out_ref):
        # Single fused conv matmul for all taps of all three kernels.
        x2 = x_ref[...].reshape(Bt * T, K_pad)
        acc = jnp.dot(x2, w_ref[...], preferred_element_type=jnp.float32)
        acc = jnp.maximum(acc + b_ref[...], 0.0)          # bias + ReLU (f32)

        # Mask padded / invalid time positions (post-ReLU, so 0 is neutral),
        # then max over time.
        acc3 = acc.reshape(Bt, T, n_pad)
        pooled = jnp.max(acc3 * mask_ref[...][None, :, :], axis=1)  # (Bt,n_pad)

        logits = jnp.dot(pooled.astype(fcw_ref.dtype), fcw_ref[...],
                         preferred_element_type=jnp.float32) + fcb_ref[...]
        out_ref[...] = logits.astype(out_ref.dtype)

    return kernel


def experiment11_forward(x_ids, params, *, batch_tile=32,
                         compute_dtype=jnp.float32):
    """Pallas implementation of Experiment11.forward (eval mode)."""
    B, L = x_ids.shape
    H = params["emb_static"].shape[1]
    num_classes = params["fc_b"].shape[-1]

    louts = [L - k + 1 for k in KS]                   # valid conv positions
    T = _round_up(max(louts), 8)                      # padded time axis
    L_in = max(L, T + KMAX - 1)                       # sequence pad for taps
    KH = KMAX * H
    K_pad = _round_up(2 * KH, 128)                    # fused contraction dim
    n_out = sum(NFMS)                                 # 450 conv channels
    n_pad = _round_up(n_out, 128)                     # 512
    c_pad = _round_up(num_classes, 128)               # 128

    # --- batch tile: fill the MXU (M = Bt*T >= 256) but keep >= 2 grid steps
    #     when the batch allows, so both v7x TensorCores get work.
    B8 = _round_up(B, 8)
    Bt = max(8, _round_up(batch_tile, 8),
             _round_up((256 + T - 1) // T, 8))
    Bt = min(Bt, max(8, (B8 // 16) * 8))
    B_pad = _round_up(B, Bt)

    # --- glue: pad ids, gather both embedding tables (cast BEFORE the gather
    #     so bf16 halves gather + DMA bytes), wrapper-side im2col ---
    ids = jnp.pad(x_ids, ((0, B_pad - B), (0, L_in - L)))   # pad with index 0
    emb_s = params["emb_static"].astype(compute_dtype)[ids]   # (B_pad,L_in,H)
    emb_ns = params["emb_ns"].astype(compute_dtype)[ids]

    def im2col(e):  # (B_pad, L_in, H) -> (B_pad, T, KMAX*H), cols = (tap, ch)
        return jnp.concatenate([e[:, j:j + T, :] for j in range(KMAX)], axis=-1)

    x = jnp.concatenate([im2col(emb_s), im2col(emb_ns)], axis=-1)  # (B,T,2KH)
    x = jnp.pad(x, ((0, 0), (0, 0), (0, K_pad - 2 * KH)))          # (B,T,K_pad)

    # --- conv weights: torch (O, 2H, k); input channels [:H] multiply the
    #     static embedding, [H:] the non-static one.  Rows laid out as
    #     (tap j, channel c) with the static block first, matching the im2col
    #     column order; missing taps (k=4) zero-padded to KMAX=5.
    def prep(w, k):
        wk = jnp.transpose(w, (2, 1, 0)).astype(jnp.float32)    # (k, 2H, O)
        wk = jnp.pad(wk, ((0, KMAX - k), (0, 0), (0, 0)))       # (KMAX, 2H, O)
        return wk[:, :H, :].reshape(KH, -1), wk[:, H:, :].reshape(KH, -1)

    pieces = [prep(params[n], k) for n, k in zip(("w1", "w2", "w3"), KS)]
    w_s = jnp.concatenate([p[0] for p in pieces], axis=1)        # (KH, 450)
    w_n = jnp.concatenate([p[1] for p in pieces], axis=1)
    w_full = jnp.concatenate([w_s, w_n], axis=0)                 # (2KH, 450)
    w_full = jnp.pad(w_full, ((0, K_pad - 2 * KH), (0, n_pad - n_out)))
    w_full = w_full.astype(compute_dtype)                        # (K_pad,n_pad)

    b_all = jnp.concatenate([params["b1"], params["b2"], params["b3"]])
    b_all = jnp.pad(b_all.astype(jnp.float32), (0, n_pad - n_out)).reshape(1, n_pad)

    fc_w = jnp.pad(params["fc_w"].astype(jnp.float32),
                   ((0, n_pad - n_out), (0, c_pad - num_classes)))
    fc_w = fc_w.astype(compute_dtype)                            # (n_pad,c_pad)
    fc_b = jnp.pad(params["fc_b"].astype(jnp.float32),
                   (0, c_pad - num_classes)).reshape(1, c_pad)

    # --- static (T, n_pad) 0/1 validity mask (t < lout per conv group) ---
    o1, o2, _ = NFMS
    ch = np.arange(n_pad)
    limit = np.where(ch < o1, louts[0],
                     np.where(ch < o1 + o2, louts[1],
                              np.where(ch < n_out, louts[2], 0)))
    mask = jnp.asarray((np.arange(T)[:, None] < limit[None, :]).astype(np.float32))

    kernel = make_kernel(Bt, T, K_pad, n_pad)

    itemsize = jnp.dtype(compute_dtype).itemsize
    flops = 2 * B_pad * T * K_pad * n_pad + 2 * B_pad * n_pad * c_pad
    bytes_accessed = (B_pad * T * K_pad * itemsize               # im2col slab
                      + K_pad * n_pad * itemsize + n_pad * 4     # conv w + b
                      + T * n_pad * 4                            # mask
                      + n_pad * c_pad * itemsize + c_pad * 4     # fc
                      + B_pad * c_pad * 4)                       # output

    out = pl.pallas_call(
        kernel,
        out_shape=jax.ShapeDtypeStruct((B_pad, c_pad), jnp.float32),
        grid=(B_pad // Bt,),
        in_specs=[
            pl.BlockSpec((Bt, T, K_pad), lambda b: (b, 0, 0)),
            pl.BlockSpec((K_pad, n_pad), lambda b: (0, 0)),
            pl.BlockSpec((1, n_pad), lambda b: (0, 0)),
            pl.BlockSpec((T, n_pad), lambda b: (0, 0)),
            pl.BlockSpec((n_pad, c_pad), lambda b: (0, 0)),
            pl.BlockSpec((1, c_pad), lambda b: (0, 0)),
        ],
        out_specs=pl.BlockSpec((Bt, c_pad), lambda b: (b, 0)),
        compiler_params=pltpu.CompilerParams(
            dimension_semantics=("parallel",)),
        cost_estimate=pl.CostEstimate(
            flops=flops, transcendentals=0, bytes_accessed=bytes_accessed),
    )(x, w_full, b_all, mask, fc_w, fc_b)

    return out[:B, :num_classes]


def reference_forward(x_ids, params):
    """Pure-JAX reference matching the PyTorch forward (eval mode)."""
    emb_s = params["emb_static"][x_ids]
    emb_ns = params["emb_ns"][x_ids]
    feat = jnp.concatenate([emb_s, emb_ns], axis=-1)            # (B, L, 2H)
    inp = jnp.transpose(feat, (0, 2, 1)).astype(jnp.float32)    # (B, 2H, L)
    pooled = []
    for wkey, bkey in (("w1", "b1"), ("w2", "b2"), ("w3", "b3")):
        y = lax.conv_general_dilated(
            inp, params[wkey].astype(jnp.float32),
            window_strides=(1,), padding="VALID",
            dimension_numbers=("NCH", "OIH", "NCH"))
        y = y + params[bkey][None, :, None]
        y = jnp.maximum(y, 0.0)
        pooled.append(jnp.max(y, axis=2))                       # (B, O)
    cat = jnp.concatenate(pooled, axis=1)                       # (B, 450)
    return cat @ params["fc_w"] + params["fc_b"]


if __name__ == "__main__":
    # small, deterministic configuration
    VOCAB, HIDDEN, SEQ, BATCH, NUM_CLASSES = 50, 32, 16, 12, 6

    key = jax.random.PRNGKey(0)
    ks = jax.random.split(key, 12)

    pre_trained_embeddings = jax.random.normal(ks[0], (VOCAB, HIDDEN), jnp.float32) * 0.1
    params = {
        # static + non-static embeddings both start from the pre-trained table
        "emb_static": pre_trained_embeddings,
        "emb_ns": pre_trained_embeddings,
        # Conv1d weights in torch layout (out_channels, in_channels=2H, k)
        "w1": jax.random.normal(ks[1], (NFMS[0], 2 * HIDDEN, KS[0]), jnp.float32) * 0.05,
        "b1": jax.random.normal(ks[2], (NFMS[0],), jnp.float32) * 0.05,
        "w2": jax.random.normal(ks[3], (NFMS[1], 2 * HIDDEN, KS[1]), jnp.float32) * 0.05,
        "b2": jax.random.normal(ks[4], (NFMS[1],), jnp.float32) * 0.05,
        "w3": jax.random.normal(ks[5], (NFMS[2], 2 * HIDDEN, KS[2]), jnp.float32) * 0.05,
        "b3": jax.random.normal(ks[6], (NFMS[2],), jnp.float32) * 0.05,
        # fc stored transposed vs torch: (450, num_classes)
        "fc_w": jax.random.normal(ks[7], (sum(NFMS), NUM_CLASSES), jnp.float32) * 0.05,
        "fc_b": jax.random.normal(ks[8], (NUM_CLASSES,), jnp.float32) * 0.05,
    }

    x_ids = jax.random.randint(ks[9], (BATCH, SEQ), 0, VOCAB, dtype=jnp.int32)

    ref = jax.block_until_ready(reference_forward(x_ids, params))

    # f32 path — tight comparison against the reference.
    out = jax.block_until_ready(
        experiment11_forward(x_ids, params, compute_dtype=jnp.float32))
    assert out.shape == (BATCH, NUM_CLASSES), out.shape
    np.testing.assert_allclose(np.asarray(out), np.asarray(ref), rtol=2e-4, atol=2e-4)

    # bf16 MXU path (recommended on v6e/v7x) — loose tolerance, f32 accumulation.
    out_bf16 = jax.block_until_ready(
        experiment11_forward(x_ids, params, compute_dtype=jnp.bfloat16))
    np.testing.assert_allclose(np.asarray(out_bf16), np.asarray(ref), rtol=3e-2, atol=3e-2)

    print("KERNEL_OK")
</pallas_src>

<mosaic_0001>
module attributes {stable_mosaic.version = 11 : i64} {
  func.func @kernel(%arg0: i32, %arg1: memref<8x16x384xf32, #tpu.memory_space<vmem>>, %arg2: memref<384x512xf32, #tpu.memory_space<vmem>>, %arg3: memref<1x512xf32, #tpu.memory_space<vmem>>, %arg4: memref<16x512xf32, #tpu.memory_space<vmem>>, %arg5: memref<512x128xf32, #tpu.memory_space<vmem>>, %arg6: memref<1x128xf32, #tpu.memory_space<vmem>>, %arg7: memref<8x128xf32, #tpu.memory_space<vmem>>) attributes {dimension_semantics = [#tpu.dimension_semantics<parallel>], iteration_bounds = array<i64: 2>, scalar_prefetch = 0 : i64, scratch_operands = 0 : i64, tpu.core_type = #tpu.core_type<tc>, window_params = [{transform_indices = @transform_0, window_bounds = array<i64: 8, 16, 384>}, {pipeline_mode = #tpu.pipeline_mode<synchronous>, transform_indices = @transform_1, window_bounds = array<i64: 384, 512>}, {pipeline_mode = #tpu.pipeline_mode<synchronous>, transform_indices = @transform_2, window_bounds = array<i64: 1, 512>}, {pipeline_mode = #tpu.pipeline_mode<synchronous>, transform_indices = @transform_3, window_bounds = array<i64: 16, 512>}, {pipeline_mode = #tpu.pipeline_mode<synchronous>, transform_indices = @transform_4, window_bounds = array<i64: 512, 128>}, {pipeline_mode = #tpu.pipeline_mode<synchronous>, transform_indices = @transform_5, window_bounds = array<i64: 1, 128>}, {transform_indices = @transform_6, window_bounds = array<i64: 8, 128>}]} {
    %c0 = arith.constant 0 : index
    %c0_0 = arith.constant 0 : index
    %c0_1 = arith.constant 0 : index
    %0 = vector.load %arg1[%c0, %c0_0, %c0_1] : memref<8x16x384xf32, #tpu.memory_space<vmem>>, vector<8x16x384xf32>
    %1 = vector.shape_cast %0 : vector<8x16x384xf32> to vector<128x384xf32>
    %c0_2 = arith.constant 0 : index
    %c0_3 = arith.constant 0 : index
    %2 = vector.load %arg2[%c0_2, %c0_3] : memref<384x512xf32, #tpu.memory_space<vmem>>, vector<384x512xf32>
    %cst = arith.constant dense<0.000000e+00> : vector<128x512xf32>
    %3 = tpu.matmul %1, %2, %cst {dimension_numbers = #tpu.dot_dimension_numbers<[1], [0], [0], [1], [0, 0, 1, 1], [], []>} : vector<128x384xf32>, vector<384x512xf32>, vector<128x512xf32> -> vector<128x512xf32>
    %c0_4 = arith.constant 0 : index
    %c0_5 = arith.constant 0 : index
    %4 = vector.load %arg3[%c0_4, %c0_5] : memref<1x512xf32, #tpu.memory_space<vmem>>, vector<1x512xf32>
    %5 = vector.broadcast %4 : vector<1x512xf32> to vector<128x512xf32>
    %6 = arith.addf %3, %5 : vector<128x512xf32>
    %cst_6 = arith.constant 0.000000e+00 : f32
    %7 = vector.broadcast %cst_6 : f32 to vector<128x512xf32>
    %8 = arith.maximumf %6, %7 : vector<128x512xf32>
    %9 = vector.shape_cast %8 : vector<128x512xf32> to vector<8x16x512xf32>
    %c0_7 = arith.constant 0 : index
    %c0_8 = arith.constant 0 : index
    %10 = vector.load %arg4[%c0_7, %c0_8] : memref<16x512xf32, #tpu.memory_space<vmem>>, vector<16x512xf32>
    %11 = vector.shape_cast %10 : vector<16x512xf32> to vector<1x16x512xf32>
    %12 = vector.broadcast %11 : vector<1x16x512xf32> to vector<8x16x512xf32>
    %13 = arith.mulf %9, %12 : vector<8x16x512xf32>
    %cst_9 = arith.constant dense<0xFF800000> : vector<8x512xf32>
    %14 = vector.multi_reduction <maximumf>, %13, %cst_9 [1] : vector<8x16x512xf32> to vector<8x512xf32>
    %c0_10 = arith.constant 0 : index
    %c0_11 = arith.constant 0 : index
    %15 = vector.load %arg5[%c0_10, %c0_11] : memref<512x128xf32, #tpu.memory_space<vmem>>, vector<512x128xf32>
    %cst_12 = arith.constant dense<0.000000e+00> : vector<8x128xf32>
    %16 = tpu.matmul %14, %15, %cst_12 {dimension_numbers = #tpu.dot_dimension_numbers<[1], [0], [0], [1], [0, 0, 1, 1], [], []>} : vector<8x512xf32>, vector<512x128xf32>, vector<8x128xf32> -> vector<8x128xf32>
    %c0_13 = arith.constant 0 : index
    %c0_14 = arith.constant 0 : index
    %17 = vector.load %arg6[%c0_13, %c0_14] : memref<1x128xf32, #tpu.memory_space<vmem>>, vector<1x128xf32>
    %18 = vector.broadcast %17 : vector<1x128xf32> to vector<8x128xf32>
    %19 = arith.addf %16, %18 : vector<8x128xf32>
    %c0_15 = arith.constant 0 : index
    %c0_16 = arith.constant 0 : index
    %20 = vector.load %arg7[%c0_15, %c0_16] : memref<8x128xf32, #tpu.memory_space<vmem>>, vector<8x128xf32>
    tpu.vector_store %arg7[%c0_15, %c0_16], %19 {strides = array<i32>} : memref<8x128xf32, #tpu.memory_space<vmem>>, vector<8x128xf32>,
    return
  }
  func.func @transform_0(%arg0: i32) -> (i32, i32, i32) {
    %c0_i32 = arith.constant 0 : i32
    %c0_i32_0 = arith.constant 0 : i32
    %c0_i32_1 = arith.constant 0 : i32
    return %arg0, %c0_i32, %c0_i32_0 : i32, i32, i32
  }
  func.func @transform_1(%arg0: i32) -> (i32, i32) {
    %c0_i32 = arith.constant 0 : i32
    %c0_i32_0 = arith.constant 0 : i32
    %c0_i32_1 = arith.constant 0 : i32
    return %c0_i32, %c0_i32_0 : i32, i32
  }
  func.func @transform_2(%arg0: i32) -> (i32, i32) {
    %c0_i32 = arith.constant 0 : i32
    %c0_i32_0 = arith.constant 0 : i32
    %c0_i32_1 = arith.constant 0 : i32
    return %c0_i32, %c0_i32_0 : i32, i32
  }
  func.func @transform_3(%arg0: i32) -> (i32, i32) {
    %c0_i32 = arith.constant 0 : i32
    %c0_i32_0 = arith.constant 0 : i32
    %c0_i32_1 = arith.constant 0 : i32
    return %c0_i32, %c0_i32_0 : i32, i32
  }
  func.func @transform_4(%arg0: i32) -> (i32, i32) {
    %c0_i32 = arith.constant 0 : i32
    %c0_i32_0 = arith.constant 0 : i32
    %c0_i32_1 = arith.constant 0 : i32
    return %c0_i32, %c0_i32_0 : i32, i32
  }
  func.func @transform_5(%arg0: i32) -> (i32, i32) {
    %c0_i32 = arith.constant 0 : i32
    %c0_i32_0 = arith.constant 0 : i32
    %c0_i32_1 = arith.constant 0 : i32
    return %c0_i32, %c0_i32_0 : i32, i32
  }
  func.func @transform_6(%arg0: i32) -> (i32, i32) {
    %c0_i32 = arith.constant 0 : i32
    %c0_i32_0 = arith.constant 0 : i32
    return %arg0, %c0_i32 : i32, i32
  }
}

</mosaic_0001>

<llo_original>
// kernel: tpu_custom_call.1
$region0: #{tpu_custom_call.1}
  #allocation0 [shape = 'u32[]', space=smem, size = 0x4, offset = 0x4, fixed_abs, tag = 'smem constant byte address 0x4 - core index']
  #allocation1 [shape = 'u32[144,128]{1,0:T(1,128)}', space=vmem, size = 0x12000, scoped, tag = 'internal scratch']
  %s0 = inlined_call_operand.hbm [shape: f32[16,16,384], index: 0, kind: input, shape index: {}]
  %s1 = inlined_call_operand.hbm [shape: f32[384,512], index: 1, kind: input, shape index: {}]
  %s2 = inlined_call_operand.vmem [shape: f32[1,512], index: 2, kind: input, shape index: {}]
  %s3 = inlined_call_operand.hbm [shape: f32[16,512], index: 3, kind: input, shape index: {}]
  %s4 = inlined_call_operand.hbm [shape: f32[512,128], index: 4, kind: input, shape index: {}]
  %s5 = inlined_call_operand.vmem [shape: f32[1,128], index: 5, kind: input, shape index: {}]
  %s6 = inlined_call_operand.hbm [shape: f32[16,128], index: 6, kind: output, shape index: {}]
  %s7 = sld [smem:[#allocation0]]
  $region73: #{tpu_custom_call.1} parent=0
    _
  %s9 = ssub.s32 1, %s7
  %s10 = scalar_select 0, %s9, %s7
  $region1: #{tpu_custom_call.1} parent=0
    #allocation2 [shape = 'u8[393216]{0}', space=vmem, size = 0x60000, scoped, tag = 'input window, operand 0']
    #allocation3 [shape = 's32[2]{0}', space=sflag, size = 0x8, scoped, tag = 'scoped memory for tpu_custom_call.1']
    #allocation4 [shape = 's32[2]{0}', space=sflag, size = 0x8, scoped, tag = 'scoped memory for tpu_custom_call.1']
    #allocation5 [shape = 'u8[786432]{0}', space=vmem, size = 0xc0000, scoped, tag = 'input window, operand 1, single buffered']
    #allocation6 [shape = 's32[1]{0}', space=sflag, size = 0x4, scoped, tag = 'scoped memory for tpu_custom_call.1']
    #allocation7 [shape = 'u8[32768]{0}', space=vmem, size = 0x8000, scoped, tag = 'input window, operand 3, single buffered']
    #allocation8 [shape = 'u8[262144]{0}', space=vmem, size = 0x40000, scoped, tag = 'input window, operand 4, single buffered']
    #allocation9 [shape = 's32[1]{0}', space=sflag, size = 0x4, scoped, tag = 'scoped memory for tpu_custom_call.1']
    #allocation10 [shape = 'u8[8192]{0}', space=vmem, size = 0x2000, scoped, tag = 'output window, operand 0']
    %11 = vsyncpa [#allocation3], 0
    %s12 = scalar_lea.sflag [#allocation3], 1
    %13 = vsyncpa %s12, 0
    %14 = vsyncpa [#allocation6], 0
    %15 = vsyncpa [#allocation9], 0
    %16 = vsyncpa [#allocation4], 0
    %s17 = scalar_lea.sflag [#allocation4], 1
    %18 = vsyncpa %s17, 0
    loop: start=0, step=1, limit=4
    $region2: #{tpu_custom_call.1} parent=1 // loop_pre_header
      _
    $region3: #{tpu_custom_call.1} parent=1 // loop_header
      %s20 = sphi 0, %s24
      %p21 = scmp.ge.s32.totalorder %s20, 4
      %s30 = sphi 0, %s32
      %s33 = sphi 0, %s30
      %s34 = sphi 0, %s33
      %s50 = sphi 0, %s34
      %s54 = sphi 0, %s54
      %s56 = sphi 0, %s54
      %s57 = sphi 0, %s56
      %s71 = sphi 0, %s57
      %s75 = sphi 0, %s75
      %s77 = sphi 0, %s75
      %s78 = sphi 0, %s77
      %s92 = sphi 0, %s78
      %s96 = sphi 0, %s96
      %s98 = sphi 0, %s96
      %s99 = sphi 0, %s98
      %s113 = sphi 0, %s99
      %s117 = sphi 0, %s117
      %s119 = sphi 0, %s117
      %s120 = sphi 0, %s119
      %s134 = sphi 0, %s120
      %s138 = sphi 0, %s138
      %s140 = sphi 0, %s138
      %s141 = sphi 0, %s140
      %s155 = sphi 0, %s141
      %s161 = sphi 0, %s163
      %s164 = sphi 0, %s161
      %s165 = sphi 0, %s164
      %s181 = sphi 0, %s165
    $region4: #{tpu_custom_call.1} parent=1 // loop_header_branch
      %23 = sbr.rel (%p21) target = $region8
    $region5: #{tpu_custom_call.1} parent=1 // loop_body
      %s25 = ssub.s32 %s20, 1
      %s26 = ssub.s32 %s20, 2
      %s27 = sadd.s32 %s20, 1
      %s28 = ssub.s32 %s20, %s27
      %p29 = scmp.eq.s32.totalorder %s28, 0
      %s31 = sadd.s32 %s30, 1
      %s32 = scalar_select %p29, %s30, %s31
      %p35 = pneg %p29
      %p36 = scmp.eq.s32.totalorder %s20, 1
      %p37 = por %p35, %p36
      %p38 = scmp.ne.s32.totalorder %s30, %s33
      %p39 = scmp.eq.s32.totalorder %s20, 0
      %p40 = por %p38, %p39
      %p41 = scmp.ne.s32.totalorder %s30, %s33
      %p42 = scmp.eq.s32.totalorder %s25, 1
      %p43 = por %p41, %p42
      %p44 = scmp.ne.s32.totalorder %s33, %s34
      %p45 = scmp.eq.s32.totalorder %s25, 0
      %p46 = por %p44, %p45
      %p47 = scmp.ne.s32.totalorder %s33, %s34
      %p48 = scmp.eq.s32.totalorder %s26, 1
      %p49 = por %p47, %p48
      %p51 = scmp.ne.s32.totalorder %s34, %s50
      %p52 = scmp.eq.s32.totalorder %s26, 0
      %p53 = por %p51, %p52
      %s55 = sadd.s32 %s54, 1
      %p58 = scmp.eq.s32.totalorder %s20, 1
      %p59 = scmp.ne.s32.totalorder %s54, %s56
      %p60 = scmp.eq.s32.totalorder %s20, 0
      %p61 = por %p59, %p60
      %p62 = scmp.ne.s32.totalorder %s54, %s56
      %p63 = scmp.eq.s32.totalorder %s25, 1
      %p64 = por %p62, %p63
      %p65 = scmp.ne.s32.totalorder %s56, %s57
      %p66 = scmp.eq.s32.totalorder %s25, 0
      %p67 = por %p65, %p66
      %p68 = scmp.ne.s32.totalorder %s56, %s57
      %p69 = scmp.eq.s32.totalorder %s26, 1
      %p70 = por %p68, %p69
      %p72 = scmp.ne.s32.totalorder %s57, %s71
      %p73 = scmp.eq.s32.totalorder %s26, 0
      %p74 = por %p72, %p73
      %s76 = sadd.s32 %s75, 1
      %p79 = scmp.eq.s32.totalorder %s20, 1
      %p80 = scmp.ne.s32.totalorder %s75, %s77
      %p81 = scmp.eq.s32.totalorder %s20, 0
      %p82 = por %p80, %p81
      %p83 = scmp.ne.s32.totalorder %s75, %s77
      %p84 = scmp.eq.s32.totalorder %s25, 1
      %p85 = por %p83, %p84
      %p86 = scmp.ne.s32.totalorder %s77, %s78
      %p87 = scmp.eq.s32.totalorder %s25, 0
      %p88 = por %p86, %p87
      %p89 = scmp.ne.s32.totalorder %s77, %s78
      %p90 = scmp.eq.s32.totalorder %s26, 1
      %p91 = por %p89, %p90
      %p93 = scmp.ne.s32.totalorder %s78, %s92
      %p94 = scmp.eq.s32.totalorder %s26, 0
      %p95 = por %p93, %p94
      %s97 = sadd.s32 %s96, 1
      %p100 = scmp.eq.s32.totalorder %s20, 1
      %p101 = scmp.ne.s32.totalorder %s96, %s98
      %p102 = scmp.eq.s32.totalorder %s20, 0
      %p103 = por %p101, %p102
      %p104 = scmp.ne.s32.totalorder %s96, %s98
      %p105 = scmp.eq.s32.totalorder %s25, 1
      %p106 = por %p104, %p105
      %p107 = scmp.ne.s32.totalorder %s98, %s99
      %p108 = scmp.eq.s32.totalorder %s25, 0
      %p109 = por %p107, %p108
      %p110 = scmp.ne.s32.totalorder %s98, %s99
      %p111 = scmp.eq.s32.totalorder %s26, 1
      %p112 = por %p110, %p111
      %p114 = scmp.ne.s32.totalorder %s99, %s113
      %p115 = scmp.eq.s32.totalorder %s26, 0
      %p116 = por %p114, %p115
      %s118 = sadd.s32 %s117, 1
      %p121 = scmp.eq.s32.totalorder %s20, 1
      %p122 = scmp.ne.s32.totalorder %s117, %s119
      %p123 = scmp.eq.s32.totalorder %s20, 0
      %p124 = por %p122, %p123
      %p125 = scmp.ne.s32.totalorder %s117, %s119
      %p126 = scmp.eq.s32.totalorder %s25, 1
      %p127 = por %p125, %p126
      %p128 = scmp.ne.s32.totalorder %s119, %s120
      %p129 = scmp.eq.s32.totalorder %s25, 0
      %p130 = por %p128, %p129
      %p131 = scmp.ne.s32.totalorder %s119, %s120
      %p132 = scmp.eq.s32.totalorder %s26, 1
      %p133 = por %p131, %p132
      %p135 = scmp.ne.s32.totalorder %s120, %s134
      %p136 = scmp.eq.s32.totalorder %s26, 0
      %p137 = por %p135, %p136
      %s139 = sadd.s32 %s138, 1
      %p142 = scmp.eq.s32.totalorder %s20, 1
      %p143 = scmp.ne.s32.totalorder %s138, %s140
      %p144 = scmp.eq.s32.totalorder %s20, 0
      %p145 = por %p143, %p144
      %p146 = scmp.ne.s32.totalorder %s138, %s140
      %p147 = scmp.eq.s32.totalorder %s25, 1
      %p148 = por %p146, %p147
      %p149 = scmp.ne.s32.totalorder %s140, %s141
      %p150 = scmp.eq.s32.totalorder %s25, 0
      %p151 = por %p149, %p150
      %p152 = scmp.ne.s32.totalorder %s140, %s141
      %p153 = scmp.eq.s32.totalorder %s26, 1
      %p154 = por %p152, %p153
      %p156 = scmp.ne.s32.totalorder %s141, %s155
      %p157 = scmp.eq.s32.totalorder %s26, 0
      %p158 = por %p156, %p157
      %s159 = ssub.s32 %s20, %s27
      %p160 = scmp.eq.s32.totalorder %s159, 0
      %s162 = sadd.s32 %s161, 1
      %s163 = scalar_select %p160, %s161, %s162
      %p166 = pneg %p160
      %p167 = scmp.eq.s32.totalorder %s20, 1
      %p168 = por %p166, %p167
      %p169 = scmp.ne.s32.totalorder %s161, %s164
      %p170 = scmp.eq.s32.totalorder %s20, 0
      %p171 = por %p169, %p170
      %p172 = scmp.ne.s32.totalorder %s161, %s164
      %p173 = scmp.eq.s32.totalorder %s25, 1
      %p174 = por %p172, %p173
      %p175 = scmp.ne.s32.totalorder %s164, %s165
      %p176 = scmp.eq.s32.totalorder %s25, 0
      %p177 = por %p175, %p176
      %p178 = scmp.ne.s32.totalorder %s164, %s165
      %p179 = scmp.eq.s32.totalorder %s26, 1
      %p180 = por %p178, %p179
      %p182 = scmp.ne.s32.totalorder %s165, %s181
      %p183 = scmp.eq.s32.totalorder %s26, 0
      %p184 = por %p182, %p183
      %p185 = scmp.le.s32.totalorder 1, %s20
      %p186 = scmp.lt.s32.totalorder %s20, 3
      %p187 = pnand %p185, %p186
      %p188 = pneg %p187
      // Predicated region
      $region9: #{tpu_custom_call.1} parent=5 // pred_check
        _
      $region10: #{tpu_custom_call.1} parent=5 // pred_check_branch
        %190 = sbr.rel (%p187) target = $region12
      $region11: #{tpu_custom_call.1} parent=5 // pred_region
        %s191 = ssub.s32 %s20, 1
        // Predicated region
        $region13: #{tpu_custom_call.1} parent=11 // pred_check
          %p192 = pneg %p67
        $region14: #{tpu_custom_call.1} parent=11 // pred_check_branch
          %194 = sbr.rel (%p192) target = $region16
        $region15: #{tpu_custom_call.1} parent=11 // pred_region
          %s196 = ssub.s32 24576, 24576
          %197 = vsyncadd [#allocation6], %s196
          %s198 = sshll.u32 [#allocation5], 4
          %s199 = int_to_ptr.vmem [resolvable:$true] %s198
          %204 = dma.hbm_to_vmem [thread:$0]  %s1, 24576, %s199, [#allocation6], 512, 512, 32
        $region16: #{tpu_custom_call.1} parent=11 // pred_fallthru
          _
        // Predicated region
        $region17: #{tpu_custom_call.1} parent=11 // pred_check
          %p205 = pneg %p88
        $region18: #{tpu_custom_call.1} parent=11 // pred_check_branch
          %207 = sbr.rel (%p205) target = $region20
        $region19: #{tpu_custom_call.1} parent=11 // pred_region
          _
        $region20: #{tpu_custom_call.1} parent=11 // pred_fallthru
          _
        // Predicated region
        $region21: #{tpu_custom_call.1} parent=11 // pred_check
          %p208 = pneg %p109
        $region22: #{tpu_custom_call.1} parent=11 // pred_check_branch
          %210 = sbr.rel (%p208) target = $region24
        $region23: #{tpu_custom_call.1} parent=11 // pred_region
          %s212 = ssub.s32 1024, 1024
          %213 = vsyncadd [#allocation6], %s212
          %s214 = sshll.u32 [#allocation7], 4
          %s215 = int_to_ptr.vmem [resolvable:$true] %s214
          %220 = dma.hbm_to_vmem [thread:$0]  %s3, 1024, %s215, [#allocation6], 512, 512, 32
        $region24: #{tpu_custom_call.1} parent=11 // pred_fallthru
          _
        // Predicated region
        $region25: #{tpu_custom_call.1} parent=11 // pred_check
          %p221 = pneg %p130
        $region26: #{tpu_custom_call.1} parent=11 // pred_check_branch
          %223 = sbr.rel (%p221) target = $region28
        $region27: #{tpu_custom_call.1} parent=11 // pred_region
          %s225 = ssub.s32 8192, 8192
          %226 = vsyncadd [#allocation9], %s225
          %s227 = sshll.u32 [#allocation8], 4
          %s228 = int_to_ptr.vmem [resolvable:$true] %s227
          %233 = dma.hbm_to_vmem [thread:$0]  %s4, 8192, %s228, [#allocation9], 128, 128, 8
        $region28: #{tpu_custom_call.1} parent=11 // pred_fallthru
          _
        // Predicated region
        $region29: #{tpu_custom_call.1} parent=11 // pred_check
          %p234 = pneg %p151
        $region30: #{tpu_custom_call.1} parent=11 // pred_check_branch
          %236 = sbr.rel (%p234) target = $region32
        $region31: #{tpu_custom_call.1} parent=11 // pred_region
          _
        $region32: #{tpu_custom_call.1} parent=11 // pred_fallthru
          _
      $region12: #{tpu_custom_call.1} parent=5 // pred_fallthru
        _
      %p237 = scmp.lt.s32.totalorder %s20, 2
      // Predicated region
      $region33: #{tpu_custom_call.1} parent=5 // pred_check
        %p238 = pneg %p237
      $region34: #{tpu_custom_call.1} parent=5 // pred_check_branch
        %240 = sbr.rel (%p238) target = $region36
      $region35: #{tpu_custom_call.1} parent=5 // pred_region
        // Predicated region
        $region37: #{tpu_custom_call.1} parent=35 // pred_check
          %p241 = pneg %p40
        $region38: #{tpu_custom_call.1} parent=35 // pred_check_branch
          %243 = sbr.rel (%p241) target = $region40
        $region39: #{tpu_custom_call.1} parent=35 // pred_region
          %s244 = sand.u32 %s30, 1
          %s245 = scalar_lea.sflag [#allocation3], %s244
          %s246 = sand.u32 %s30, 1
          %s247 = smul.addr %s246, 384
          %s248 = scalar_lea.vmem [#allocation2], %s247
          %s249 = smul.u32 8, %s20
          %s251 = ssub.s32 6144, 6144
          %252 = vsyncadd %s245, %s251
          %s253 = smul.addr %s249, 6
          %s254 = smul.addr %s253, 128
          %s255 = scalar_lea.hbm %s0, %s254
          %s256 = sshll.u32 %s248, 4
          %s257 = int_to_ptr.vmem [resolvable:$true] %s256
          %262 = dma.hbm_to_vmem [thread:$0]  %s255, 6144, %s257, %s245, 384, 384, 24
        $region40: #{tpu_custom_call.1} parent=35 // pred_fallthru
          _
      $region36: #{tpu_custom_call.1} parent=5 // pred_fallthru
        _
      %p263 = scmp.le.s32.totalorder 1, %s20
      %p264 = scmp.lt.s32.totalorder %s20, 3
      %p265 = pnand %p263, %p264
      %p266 = pneg %p265
      // Predicated region
      $region41: #{tpu_custom_call.1} parent=5 // pred_check
        _
      $region42: #{tpu_custom_call.1} parent=5 // pred_check_branch
        %268 = sbr.rel (%p265) target = $region44
      $region43: #{tpu_custom_call.1} parent=5 // pred_region
        %s269 = ssub.s32 %s20, 1
        %s270 = sand.u32 %s33, 1
        %s271 = scalar_lea.sflag [#allocation3], %s270
        %s272 = sand.u32 %s33, 1
        %s273 = smul.addr %s272, 384
        %s274 = scalar_lea.vmem [#allocation2], %s273
        // Predicated region
        $region45: #{tpu_custom_call.1} parent=43 // pred_check
          %p275 = pneg %p46
        $region46: #{tpu_custom_call.1} parent=43 // pred_check_branch
          %277 = sbr.rel (%p275) target = $region48
        $region47: #{tpu_custom_call.1} parent=43 // pred_region
          %278 = dma.done %s271, 6144
        $region48: #{tpu_custom_call.1} parent=43 // pred_fallthru
          _
        // Predicated region
        $region49: #{tpu_custom_call.1} parent=43 // pred_check
          %p279 = pneg %p67
        $region50: #{tpu_custom_call.1} parent=43 // pred_check_branch
          %281 = sbr.rel (%p279) target = $region52
        $region51: #{tpu_custom_call.1} parent=43 // pred_region
          %282 = dma.done [#allocation6], 24576
        $region52: #{tpu_custom_call.1} parent=43 // pred_fallthru
          _
        // Predicated region
        $region53: #{tpu_custom_call.1} parent=43 // pred_check
          %p283 = pneg %p109
        $region54: #{tpu_custom_call.1} parent=43 // pred_check_branch
          %285 = sbr.rel (%p283) target = $region56
        $region55: #{tpu_custom_call.1} parent=43 // pred_region
          %286 = dma.done [#allocation6], 1024
        $region56: #{tpu_custom_call.1} parent=43 // pred_fallthru
          _
        // Predicated region
        $region57: #{tpu_custom_call.1} parent=43 // pred_check
          %p287 = pneg %p130
        $region58: #{tpu_custom_call.1} parent=43 // pred_check_branch
          %289 = sbr.rel (%p287) target = $region60
        $region59: #{tpu_custom_call.1} parent=43 // pred_region
          %290 = dma.done [#allocation9], 8192
        $region60: #{tpu_custom_call.1} parent=43 // pred_fallthru
          _
        %s291 = sand.u32 %s33, 1
        %s292 = scalar_lea.sflag [#allocation3], %s291
        %s293 = sand.u32 %s33, 1
        %s294 = smul.addr %s293, 384
        %s295 = scalar_lea.vmem [#allocation2], %s294
        %p296 = pneg %p46
        %p297 = pneg %p43
        %p298 = pneg %p67
        %p299 = pneg %p64
        %p300 = pneg %p88
        %p301 = pneg %p85
        %p302 = pneg %p109
        %p303 = pneg %p106
        %p304 = pneg %p130
        %p305 = pneg %p127
        %p306 = pneg %p151
        %p307 = pneg %p148
        %p308 = pneg %p177
        %p309 = pneg %p174
        %s310 = sand.u32 %s164, 1
        %s311 = scalar_lea.sflag [#allocation4], %s310
        %s312 = sand.u32 %s164, 1
        %s313 = smul.addr %s312, 8
        %s314 = scalar_lea.vmem [#allocation10], %s313
        %s315 = smul.u32 8, %s25
        %v316 = vld [vmem:[%s274] sm:$0xff]
        %v317 = vld [vmem:[%s274 + $0x8] sm:$0xff]
        %v318 = vld [vmem:[%s274 + $0x10] sm:$0xff]
        %v319 = vld [vmem:[%s274 + $0x18] sm:$0xff]
        %v320 = vld [vmem:[%s274 + $0x20] sm:$0xff]
        %v321 = vld [vmem:[%s274 + $0x28] sm:$0xff]
        %v322 = vld [vmem:[%s274 + $0x30] sm:$0xff]
        %v323 = vld [vmem:[%s274 + $0x38] sm:$0xff]
        %v324 = vld [vmem:[%s274 + $0x40] sm:$0xff]
        %v325 = vld [vmem:[%s274 + $0x48] sm:$0xff]
        %v326 = vld [vmem:[%s274 + $0x50] sm:$0xff]
        %v327 = vld [vmem:[%s274 + $0x58] sm:$0xff]
        %v328 = vld [vmem:[%s274 + $0x60] sm:$0xff]
        %v329 = vld [vmem:[%s274 + $0x68] sm:$0xff]
        %v330 = vld [vmem:[%s274 + $0x70] sm:$0xff]
        %v331 = vld [vmem:[%s274 + $0x78] sm:$0xff]
        %v332 = vld [vmem:[%s274 + $0x80] sm:$0xff]
        %v333 = vld [vmem:[%s274 + $0x88] sm:$0xff]
        %v334 = vld [vmem:[%s274 + $0x90] sm:$0xff]
        %v335 = vld [vmem:[%s274 + $0x98] sm:$0xff]
        %v336 = vld [vmem:[%s274 + $0xa0] sm:$0xff]
        %v337 = vld [vmem:[%s274 + $0xa8] sm:$0xff]
        %v338 = vld [vmem:[%s274 + $0xb0] sm:$0xff]
        %v339 = vld [vmem:[%s274 + $0xb8] sm:$0xff]
        %v340 = vld [vmem:[%s274 + $0xc0] sm:$0xff]
        %v341 = vld [vmem:[%s274 + $0xc8] sm:$0xff]
        %v342 = vld [vmem:[%s274 + $0xd0] sm:$0xff]
        %v343 = vld [vmem:[%s274 + $0xd8] sm:$0xff]
        %v344 = vld [vmem:[%s274 + $0xe0] sm:$0xff]
        %v345 = vld [vmem:[%s274 + $0xe8] sm:$0xff]
        %v346 = vld [vmem:[%s274 + $0xf0] sm:$0xff]
        %v347 = vld [vmem:[%s274 + $0xf8] sm:$0xff]
        %v348 = vld [vmem:[%s274 + $0x100] sm:$0xff]
        %v349 = vld [vmem:[%s274 + $0x108] sm:$0xff]
        %v350 = vld [vmem:[%s274 + $0x110] sm:$0xff]
        %v351 = vld [vmem:[%s274 + $0x118] sm:$0xff]
        %v352 = vld [vmem:[%s274 + $0x120] sm:$0xff]
        %v353 = vld [vmem:[%s274 + $0x128] sm:$0xff]
        %v354 = vld [vmem:[%s274 + $0x130] sm:$0xff]
        %v355 = vld [vmem:[%s274 + $0x138] sm:$0xff]
        %v356 = vld [vmem:[%s274 + $0x140] sm:$0xff]
        %v357 = vld [vmem:[%s274 + $0x148] sm:$0xff]
        %v358 = vld [vmem:[%s274 + $0x150] sm:$0xff]
        %v359 = vld [vmem:[%s274 + $0x158] sm:$0xff]
        %v360 = vld [vmem:[%s274 + $0x160] sm:$0xff]
        %v361 = vld [vmem:[%s274 + $0x168] sm:$0xff]
        %v362 = vld [vmem:[%s274 + $0x170] sm:$0xff]
        %v363 = vld [vmem:[%s274 + $0x178] sm:$0xff]
        %v364 = vld [vmem:[#allocation5] sm:$0xff]
        %v365 = vld [vmem:[#allocation5 + $0x8] sm:$0xff]
        %v366 = vld [vmem:[#allocation5 + $0x10] sm:$0xff]
        %v367 = vld [vmem:[#allocation5 + $0x18] sm:$0xff]
        %v368 = vld [vmem:[#allocation5 + $0x20] sm:$0xff]
        %v369 = vld [vmem:[#allocation5 + $0x28] sm:$0xff]
        %v370 = vld [vmem:[#allocation5 + $0x30] sm:$0xff]
        %v371 = vld [vmem:[#allocation5 + $0x38] sm:$0xff]
        %v372 = vld [vmem:[#allocation5 + $0x40] sm:$0xff]
        %v373 = vld [vmem:[#allocation5 + $0x48] sm:$0xff]
        %v374 = vld [vmem:[#allocation5 + $0x50] sm:$0xff]
        %v375 = vld [vmem:[#allocation5 + $0x58] sm:$0xff]
        %v376 = vld [vmem:[#allocation5 + $0x60] sm:$0xff]
        %v377 = vld [vmem:[#allocation5 + $0x68] sm:$0xff]
        %v378 = vld [vmem:[#allocation5 + $0x70] sm:$0xff]
        %v379 = vld [vmem:[#allocation5 + $0x78] sm:$0xff]
        %v380 = vld [vmem:[#allocation5 + $0x80] sm:$0xff]
        %v381 = vld [vmem:[#allocation5 + $0x88] sm:$0xff]
        %v382 = vld [vmem:[#allocation5 + $0x90] sm:$0xff]
        %v383 = vld [vmem:[#allocation5 + $0x98] sm:$0xff]
        %v384 = vld [vmem:[#allocation5 + $0xa0] sm:$0xff]
        %v385 = vld [vmem:[#allocation5 + $0xa8] sm:$0xff]
        %v386 = vld [vmem:[#allocation5 + $0xb0] sm:$0xff]
        %v387 = vld [vmem:[#allocation5 + $0xb8] sm:$0xff]
        %v388 = vld [vmem:[#allocation5 + $0xc0] sm:$0xff]
        %v389 = vld [vmem:[#allocation5 + $0xc8] sm:$0xff]
        %v390 = vld [vmem:[#allocation5 + $0xd0] sm:$0xff]
        %v391 = vld [vmem:[#allocation5 + $0xd8] sm:$0xff]
        %v392 = vld [vmem:[#allocation5 + $0xe0] sm:$0xff]
        %v393 = vld [vmem:[#allocation5 + $0xe8] sm:$0xff]
        %v394 = vld [vmem:[#allocation5 + $0xf0] sm:$0xff]
        %v395 = vld [vmem:[#allocation5 + $0xf8] sm:$0xff]
        %v396 = vld [vmem:[#allocation5 + $0x100] sm:$0xff]
        %v397 = vld [vmem:[#allocation5 + $0x108] sm:$0xff]
        %v398 = vld [vmem:[#allocation5 + $0x110] sm:$0xff]
        %v399 = vld [vmem:[#allocation5 + $0x118] sm:$0xff]
        %v400 = vld [vmem:[#allocation5 + $0x120] sm:$0xff]
        %v401 = vld [vmem:[#allocation5 + $0x128] sm:$0xff]
        %v402 = vld [vmem:[#allocation5 + $0x130] sm:$0xff]
        %v403 = vld [vmem:[#allocation5 + $0x138] sm:$0xff]
        %v404 = vld [vmem:[#allocation5 + $0x140] sm:$0xff]
        %v405 = vld [vmem:[#allocation5 + $0x148] sm:$0xff]
        %v406 = vld [vmem:[#allocation5 + $0x150] sm:$0xff]
        %v407 = vld [vmem:[#allocation5 + $0x158] sm:$0xff]
        %v408 = vld [vmem:[#allocation5 + $0x160] sm:$0xff]
        %v409 = vld [vmem:[#allocation5 + $0x168] sm:$0xff]
        %v410 = vld [vmem:[#allocation5 + $0x170] sm:$0xff]
        %v411 = vld [vmem:[#allocation5 + $0x178] sm:$0xff]
        %v412 = vld [vmem:[#allocation5 + $0x180] sm:$0xff]
        %v413 = vld [vmem:[#allocation5 + $0x188] sm:$0xff]
        %v414 = vld [vmem:[#allocation5 + $0x190] sm:$0xff]
        %v415 = vld [vmem:[#allocation5 + $0x198] sm:$0xff]
        %v416 = vld [vmem:[#allocation5 + $0x1a0] sm:$0xff]
        %v417 = vld [vmem:[#allocation5 + $0x1a8] sm:$0xff]
        %v418 = vld [vmem:[#allocation5 + $0x1b0] sm:$0xff]
        %v419 = vld [vmem:[#allocation5 + $0x1b8] sm:$0xff]
        %v420 = vld [vmem:[#allocation5 + $0x1c0] sm:$0xff]
        %v421 = vld [vmem:[#allocation5 + $0x1c8] sm:$0xff]
        %v422 = vld [vmem:[#allocation5 + $0x1d0] sm:$0xff]
        %v423 = vld [vmem:[#allocation5 + $0x1d8] sm:$0xff]
        %v424 = vld [vmem:[#allocation5 + $0x1e0] sm:$0xff]
        %v425 = vld [vmem:[#allocation5 + $0x1e8] sm:$0xff]
        %v426 = vld [vmem:[#allocation5 + $0x1f0] sm:$0xff]
        %v427 = vld [vmem:[#allocation5 + $0x1f8] sm:$0xff]
        %v428 = vld [vmem:[#allocation5 + $0x200] sm:$0xff]
        %v429 = vld [vmem:[#allocation5 + $0x208] sm:$0xff]
        %v430 = vld [vmem:[#allocation5 + $0x210] sm:$0xff]
        %v431 = vld [vmem:[#allocation5 + $0x218] sm:$0xff]
        %v432 = vld [vmem:[#allocation5 + $0x220] sm:$0xff]
        %v433 = vld [vmem:[#allocation5 + $0x228] sm:$0xff]
        %v434 = vld [vmem:[#allocation5 + $0x230] sm:$0xff]
        %v435 = vld [vmem:[#allocation5 + $0x238] sm:$0xff]
        %v436 = vld [vmem:[#allocation5 + $0x240] sm:$0xff]
        %v437 = vld [vmem:[#allocation5 + $0x248] sm:$0xff]
        %v438 = vld [vmem:[#allocation5 + $0x250] sm:$0xff]
        %v439 = vld [vmem:[#allocation5 + $0x258] sm:$0xff]
        %v440 = vld [vmem:[#allocation5 + $0x260] sm:$0xff]
        %v441 = vld [vmem:[#allocation5 + $0x268] sm:$0xff]
        %v442 = vld [vmem:[#allocation5 + $0x270] sm:$0xff]
        %v443 = vld [vmem:[#allocation5 + $0x278] sm:$0xff]
        %v444 = vld [vmem:[#allocation5 + $0x280] sm:$0xff]
        %v445 = vld [vmem:[#allocation5 + $0x288] sm:$0xff]
        %v446 = vld [vmem:[#allocation5 + $0x290] sm:$0xff]
        %v447 = vld [vmem:[#allocation5 + $0x298] sm:$0xff]
        %v448 = vld [vmem:[#allocation5 + $0x2a0] sm:$0xff]
        %v449 = vld [vmem:[#allocation5 + $0x2a8] sm:$0xff]
        %v450 = vld [vmem:[#allocation5 + $0x2b0] sm:$0xff]
        %v451 = vld [vmem:[#allocation5 + $0x2b8] sm:$0xff]
        %v452 = vld [vmem:[#allocation5 + $0x2c0] sm:$0xff]
        %v453 = vld [vmem:[#allocation5 + $0x2c8] sm:$0xff]
        %v454 = vld [vmem:[#allocation5 + $0x2d0] sm:$0xff]
        %v455 = vld [vmem:[#allocation5 + $0x2d8] sm:$0xff]
        %v456 = vld [vmem:[#allocation5 + $0x2e0] sm:$0xff]
        %v457 = vld [vmem:[#allocation5 + $0x2e8] sm:$0xff]
        %v458 = vld [vmem:[#allocation5 + $0x2f0] sm:$0xff]
        %v459 = vld [vmem:[#allocation5 + $0x2f8] sm:$0xff]
        %v460 = vld [vmem:[#allocation5 + $0x300] sm:$0xff]
        %v461 = vld [vmem:[#allocation5 + $0x308] sm:$0xff]
        %v462 = vld [vmem:[#allocation5 + $0x310] sm:$0xff]
        %v463 = vld [vmem:[#allocation5 + $0x318] sm:$0xff]
        %v464 = vld [vmem:[#allocation5 + $0x320] sm:$0xff]
        %v465 = vld [vmem:[#allocation5 + $0x328] sm:$0xff]
        %v466 = vld [vmem:[#allocation5 + $0x330] sm:$0xff]
        %v467 = vld [vmem:[#allocation5 + $0x338] sm:$0xff]
        %v468 = vld [vmem:[#allocation5 + $0x340] sm:$0xff]
        %v469 = vld [vmem:[#allocation5 + $0x348] sm:$0xff]
        %v470 = vld [vmem:[#allocation5 + $0x350] sm:$0xff]
        %v471 = vld [vmem:[#allocation5 + $0x358] sm:$0xff]
        %v472 = vld [vmem:[#allocation5 + $0x360] sm:$0xff]
        %v473 = vld [vmem:[#allocation5 + $0x368] sm:$0xff]
        %v474 = vld [vmem:[#allocation5 + $0x370] sm:$0xff]
        %v475 = vld [vmem:[#allocation5 + $0x378] sm:$0xff]
        %v476 = vld [vmem:[#allocation5 + $0x380] sm:$0xff]
        %v477 = vld [vmem:[#allocation5 + $0x388] sm:$0xff]
        %v478 = vld [vmem:[#allocation5 + $0x390] sm:$0xff]
        %v479 = vld [vmem:[#allocation5 + $0x398] sm:$0xff]
        %v480 = vld [vmem:[#allocation5 + $0x3a0] sm:$0xff]
        %v481 = vld [vmem:[#allocation5 + $0x3a8] sm:$0xff]
        %v482 = vld [vmem:[#allocation5 + $0x3b0] sm:$0xff]
        %v483 = vld [vmem:[#allocation5 + $0x3b8] sm:$0xff]
        %v484 = vld [vmem:[#allocation5 + $0x3c0] sm:$0xff]
        %v485 = vld [vmem:[#allocation5 + $0x3c8] sm:$0xff]
        %v486 = vld [vmem:[#allocation5 + $0x3d0] sm:$0xff]
        %v487 = vld [vmem:[#allocation5 + $0x3d8] sm:$0xff]
        %v488 = vld [vmem:[#allocation5 + $0x3e0] sm:$0xff]
        %v489 = vld [vmem:[#allocation5 + $0x3e8] sm:$0xff]
        %v490 = vld [vmem:[#allocation5 + $0x3f0] sm:$0xff]
        %v491 = vld [vmem:[#allocation5 + $0x3f8] sm:$0xff]
        %v492 = vld [vmem:[#allocation5 + $0x400] sm:$0xff]
        %v493 = vld [vmem:[#allocation5 + $0x408] sm:$0xff]
        %v494 = vld [vmem:[#allocation5 + $0x410] sm:$0xff]
        %v495 = vld [vmem:[#allocation5 + $0x418] sm:$0xff]
        %v496 = vld [vmem:[#allocation5 + $0x420] sm:$0xff]
        %v497 = vld [vmem:[#allocation5 + $0x428] sm:$0xff]
        %v498 = vld [vmem:[#allocation5 + $0x430] sm:$0xff]
        %v499 = vld [vmem:[#allocation5 + $0x438] sm:$0xff]
        %v500 = vld [vmem:[#allocation5 + $0x440] sm:$0xff]
        %v501 = vld [vmem:[#allocation5 + $0x448] sm:$0xff]
        %v502 = vld [vmem:[#allocation5 + $0x450] sm:$0xff]
        %v503 = vld [vmem:[#allocation5 + $0x458] sm:$0xff]
        %v504 = vld [vmem:[#allocation5 + $0x460] sm:$0xff]
        %v505 = vld [vmem:[#allocation5 + $0x468] sm:$0xff]
        %v506 = vld [vmem:[#allocation5 + $0x470] sm:$0xff]
        %v507 = vld [vmem:[#allocation5 + $0x478] sm:$0xff]
        %v508 = vld [vmem:[#allocation5 + $0x480] sm:$0xff]
        %v509 = vld [vmem:[#allocation5 + $0x488] sm:$0xff]
        %v510 = vld [vmem:[#allocation5 + $0x490] sm:$0xff]
        %v511 = vld [vmem:[#allocation5 + $0x498] sm:$0xff]
        %v512 = vld [vmem:[#allocation5 + $0x4a0] sm:$0xff]
        %v513 = vld [vmem:[#allocation5 + $0x4a8] sm:$0xff]
        %v514 = vld [vmem:[#allocation5 + $0x4b0] sm:$0xff]
        %v515 = vld [vmem:[#allocation5 + $0x4b8] sm:$0xff]
        %v516 = vld [vmem:[#allocation5 + $0x4c0] sm:$0xff]
        %v517 = vld [vmem:[#allocation5 + $0x4c8] sm:$0xff]
        %v518 = vld [vmem:[#allocation5 + $0x4d0] sm:$0xff]
        %v519 = vld [vmem:[#allocation5 + $0x4d8] sm:$0xff]
        %v520 = vld [vmem:[#allocation5 + $0x4e0] sm:$0xff]
        %v521 = vld [vmem:[#allocation5 + $0x4e8] sm:$0xff]
        %v522 = vld [vmem:[#allocation5 + $0x4f0] sm:$0xff]
        %v523 = vld [vmem:[#allocation5 + $0x4f8] sm:$0xff]
        %v524 = vld [vmem:[#allocation5 + $0x500] sm:$0xff]
        %v525 = vld [vmem:[#allocation5 + $0x508] sm:$0xff]
        %v526 = vld [vmem:[#allocation5 + $0x510] sm:$0xff]
        %v527 = vld [vmem:[#allocation5 + $0x518] sm:$0xff]
        %v528 = vld [vmem:[#allocation5 + $0x520] sm:$0xff]
        %v529 = vld [vmem:[#allocation5 + $0x528] sm:$0xff]
        %v530 = vld [vmem:[#allocation5 + $0x530] sm:$0xff]
        %v531 = vld [vmem:[#allocation5 + $0x538] sm:$0xff]
        %v532 = vld [vmem:[#allocation5 + $0x540] sm:$0xff]
        %v533 = vld [vmem:[#allocation5 + $0x548] sm:$0xff]
        %v534 = vld [vmem:[#allocation5 + $0x550] sm:$0xff]
        %v535 = vld [vmem:[#allocation5 + $0x558] sm:$0xff]
        %v536 = vld [vmem:[#allocation5 + $0x560] sm:$0xff]
        %v537 = vld [vmem:[#allocation5 + $0x568] sm:$0xff]
        %v538 = vld [vmem:[#allocation5 + $0x570] sm:$0xff]
        %v539 = vld [vmem:[#allocation5 + $0x578] sm:$0xff]
        %v540 = vld [vmem:[#allocation5 + $0x580] sm:$0xff]
        %v541 = vld [vmem:[#allocation5 + $0x588] sm:$0xff]
        %v542 = vld [vmem:[#allocation5 + $0x590] sm:$0xff]
        %v543 = vld [vmem:[#allocation5 + $0x598] sm:$0xff]
        %v544 = vld [vmem:[#allocation5 + $0x5a0] sm:$0xff]
        %v545 = vld [vmem:[#allocation5 + $0x5a8] sm:$0xff]
        %v546 = vld [vmem:[#allocation5 + $0x5b0] sm:$0xff]
        %v547 = vld [vmem:[#allocation5 + $0x5b8] sm:$0xff]
        %v548 = vld [vmem:[#allocation5 + $0x5c0] sm:$0xff]
        %v549 = vld [vmem:[#allocation5 + $0x5c8] sm:$0xff]
        %v550 = vld [vmem:[#allocation5 + $0x5d0] sm:$0xff]
        %v551 = vld [vmem:[#allocation5 + $0x5d8] sm:$0xff]
        %v552 = vld [vmem:[#allocation5 + $0x5e0] sm:$0xff]
        %v553 = vld [vmem:[#allocation5 + $0x5e8] sm:$0xff]
        %v554 = vld [vmem:[#allocation5 + $0x5f0] sm:$0xff]
        %v555 = vld [vmem:[#allocation5 + $0x5f8] sm:$0xff]
        %v556 = vld [vmem:[%s2] sm:$0xf]
        %v558 = vlaneseq
        %v559 = vshrl.u32 %v558, 7
        %v560 = vsub.s32 0, %v559
        %v561 = vrot.slane %v556, %v560
        %v562 = vlaneseq
        %v563 = vshrl.u32 %v562, 7
        %v564 = vsub.s32 1, %v563
        %v565 = vrot.slane %v556, %v564
        %v566 = vlaneseq
        %v567 = vshrl.u32 %v566, 7
        %v568 = vsub.s32 2, %v567
        %v569 = vrot.slane %v556, %v568
        %v570 = vlaneseq
        %v571 = vshrl.u32 %v570, 7
        %v572 = vsub.s32 3, %v571
        %v573 = vrot.slane %v556, %v572
        %578 = vmatprep.subr.mxu0 %v365
        %579 = vmatpush1.msra.mxu0 %v364
        %580 = vmatprep.subr.mxu0 %v369
        %581 = vmatpush1.msra.mxu0 %v368
        %582 = vmatprep.subr.mxu0 %v373
        %583 = vmatpush1.msra.mxu0 %v372
        %584 = vmatprep.subr.mxu0 %v377
        %585 = vmatpush1.msra.mxu0 %v376
        %586 = vmatprep.subr.mxu0 %v381
        %587 = vmatpush1.msra.mxu0 %v380
        %588 = vmatprep.subr.mxu0 %v385
        %589 = vmatpush1.msra.mxu0 %v384
        %590 = vmatprep.subr.mxu0 %v389
        %591 = vmatpush1.msra.mxu0 %v388
        %592 = vmatprep.subr.mxu0 %v393
        %593 = vmatpush1.msra.mxu0 %v392
        %594 = vmatprep.subr.mxu0 %v397
        %595 = vmatpush1.msra.mxu0 %v396
        %596 = vmatprep.subr.mxu0 %v401
        %597 = vmatpush1.msra.mxu0 %v400
        %598 = vmatprep.subr.mxu0 %v405
        %599 = vmatpush1.msra.mxu0 %v404
        %600 = vmatprep.subr.mxu0 %v409
        %601 = vmatpush1.msra.mxu0 %v408
        %602 = vmatprep.subr.mxu0 %v413
        %603 = vmatpush1.msra.mxu0 %v412
        %604 = vmatprep.subr.mxu0 %v417
        %605 = vmatpush1.msra.mxu0 %v416
        %606 = vmatprep.subr.mxu0 %v421
        %607 = vmatpush1.msra.mxu0 %v420
        %608 = vmatprep.subr.mxu0 %v425
        %609 = vmatpush1.msra.mxu0 %v424
        %610 = vmatprep.subr.mxu0 %v429
        %611 = vmatpush1.msra.mxu0 %v428
        %612 = vmatprep.subr.mxu0 %v433
        %613 = vmatpush1.msra.mxu0 %v432
        %614 = vmatprep.subr.mxu0 %v437
        %615 = vmatpush1.msra.mxu0 %v436
        %616 = vmatprep.subr.mxu0 %v441
        %617 = vmatpush1.msra.mxu0 %v440
        %618 = vmatprep.subr.mxu0 %v445
        %619 = vmatpush1.msra.mxu0 %v444
        %620 = vmatprep.subr.mxu0 %v449
        %621 = vmatpush1.msra.mxu0 %v448
        %622 = vmatprep.subr.mxu0 %v453
        %623 = vmatpush1.msra.mxu0 %v452
        %624 = vmatprep.subr.mxu0 %v457
        %625 = vmatpush1.msra.mxu0 %v456
        %626 = vmatprep.subr.mxu0 %v461
        %627 = vmatpush1.msra.mxu0 %v460
        %628 = vmatprep.subr.mxu0 %v465
        %629 = vmatpush1.msra.mxu0 %v464
        %630 = vmatprep.subr.mxu0 %v469
        %631 = vmatpush1.msra.mxu0 %v468
        %632 = vmatprep.subr.mxu0 %v473
        %633 = vmatpush1.msra.mxu0 %v472
        %634 = vmatprep.subr.mxu0 %v477
        %635 = vmatpush1.msra.mxu0 %v476
        %636 = vmatprep.subr.mxu0 %v481
        %637 = vmatpush1.msra.mxu0 %v480
        %638 = vmatprep.subr.mxu0 %v485
        %639 = vmatpush1.msra.mxu0 %v484
        %640 = vmatprep.subr.mxu0 %v489
        %641 = vmatpush1.msra.mxu0 %v488
        %642 = vmatprep.mubr.f32.mxu0 %v317
        %643 = vmatmul.mubr.f32.gmra.mrb[0].mxu0 %v316
        %v644 = vpop.f32.mrb[0].mxu0
        %v645 = vadd.f32 %v561, %v644
        %v646 = vpop.f32.mrb[0].mxu0
        %v647 = vadd.f32 %v565, %v646
        %648 = vmatprep.mubr.f32.mxu0 %v320
        %649 = vmatmul.mubr.f32.gmra.mrb[0].mxu0 %v319
        %v650 = vpop.f32.mrb[0].mxu0
        %v651 = vadd.f32 %v561, %v650
        %v652 = vpop.f32.mrb[0].mxu0
        %v653 = vadd.f32 %v565, %v652
        %654 = vmatprep.mubr.f32.mxu0 %v323
        %655 = vmatmul.mubr.f32.gmra.mrb[0].mxu0 %v322
        %v656 = vpop.f32.mrb[0].mxu0
        %v657 = vadd.f32 %v561, %v656
        %v658 = vpop.f32.mrb[0].mxu0
        %v659 = vadd.f32 %v565, %v658
        %660 = vmatprep.mubr.f32.mxu0 %v326
        %661 = vmatmul.mubr.f32.gmra.mrb[0].mxu0 %v325
        %v662 = vpop.f32.mrb[0].mxu0
        %v663 = vadd.f32 %v561, %v662
        %v664 = vpop.f32.mrb[0].mxu0
        %v665 = vadd.f32 %v565, %v664
        %666 = vmatprep.mubr.f32.mxu0 %v329
        %667 = vmatmul.mubr.f32.gmra.mrb[0].mxu0 %v328
        %v668 = vpop.f32.mrb[0].mxu0
        %v669 = vadd.f32 %v561, %v668
        %v670 = vpop.f32.mrb[0].mxu0
        %v671 = vadd.f32 %v565, %v670
        %672 = vmatprep.mubr.f32.mxu0 %v332
        %673 = vmatmul.mubr.f32.gmra.mrb[0].mxu0 %v331
        %v674 = vpop.f32.mrb[0].mxu0
        %v675 = vadd.f32 %v561, %v674
        %v676 = vpop.f32.mrb[0].mxu0
        %v677 = vadd.f32 %v565, %v676
        %678 = vmatprep.mubr.f32.mxu0 %v335
        %679 = vmatmul.mubr.f32.gmra.mrb[0].mxu0 %v334
        %v680 = vpop.f32.mrb[0].mxu0
        %v681 = vadd.f32 %v561, %v680
        %v682 = vpop.f32.mrb[0].mxu0
        %v683 = vadd.f32 %v565, %v682
        %684 = vmatprep.mubr.f32.mxu0 %v338
        %685 = vmatmul.mubr.f32.gmra.mrb[0].mxu0 %v337
        %v686 = vpop.f32.mrb[0].mxu0
        %v687 = vadd.f32 %v561, %v686
        %v688 = vpop.f32.mrb[0].mxu0
        %v689 = vadd.f32 %v565, %v688
        %690 = vmatprep.mubr.f32.mxu0 %v341
        %691 = vmatmul.mubr.f32.gmra.mrb[0].mxu0 %v340
        %v692 = vpop.f32.mrb[0].mxu0
        %v693 = vadd.f32 %v561, %v692
        %v694 = vpop.f32.mrb[0].mxu0
        %v695 = vadd.f32 %v565, %v694
        %696 = vmatprep.mubr.f32.mxu0 %v344
        %697 = vmatmul.mubr.f32.gmra.mrb[0].mxu0 %v343
        %v698 = vpop.f32.mrb[0].mxu0
        %v699 = vadd.f32 %v561, %v698
        %v700 = vpop.f32.mrb[0].mxu0
        %v701 = vadd.f32 %v565, %v700
        %702 = vmatprep.mubr.f32.mxu0 %v347
        %703 = vmatmul.mubr.f32.gmra.mrb[0].mxu0 %v346
        %v704 = vpop.f32.mrb[0].mxu0
        %v705 = vadd.f32 %v561, %v704
        %v706 = vpop.f32.mrb[0].mxu0
        %v707 = vadd.f32 %v565, %v706
        %708 = vmatprep.mubr.f32.mxu0 %v350
        %709 = vmatmul.mubr.f32.gmra.mrb[0].mxu0 %v349
        %v710 = vpop.f32.mrb[0].mxu0
        %v711 = vadd.f32 %v561, %v710
        %v712 = vpop.f32.mrb[0].mxu0
        %v713 = vadd.f32 %v565, %v712
        %714 = vmatprep.mubr.f32.mxu0 %v353
        %715 = vmatmul.mubr.f32.gmra.mrb[0].mxu0 %v352
        %v716 = vpop.f32.mrb[0].mxu0
        %v717 = vadd.f32 %v561, %v716
        %v718 = vpop.f32.mrb[0].mxu0
        %v719 = vadd.f32 %v565, %v718
        %720 = vmatprep.mubr.f32.mxu0 %v356
        %721 = vmatmul.mubr.f32.gmra.mrb[0].mxu0 %v355
        %v722 = vpop.f32.mrb[0].mxu0
        %v723 = vadd.f32 %v561, %v722
        %v724 = vpop.f32.mrb[0].mxu0
        %v725 = vadd.f32 %v565, %v724
        %726 = vmatprep.mubr.f32.mxu0 %v359
        %727 = vmatmul.mubr.f32.gmra.mrb[0].mxu0 %v358
        %v728 = vpop.f32.mrb[0].mxu0
        %v729 = vadd.f32 %v561, %v728
        %v730 = vpop.f32.mrb[0].mxu0
        %v731 = vadd.f32 %v565, %v730
        %732 = vmatprep.mubr.f32.mxu0 %v362
        %733 = vmatmul.mubr.f32.gmra.mrb[0].mxu0 %v361
        %v734 = vpop.f32.mrb[0].mxu0
        %v735 = vadd.f32 %v561, %v734
        %v736 = vpop.f32.mrb[0].mxu0
        %v737 = vadd.f32 %v565, %v736
        %738 = vdwg.mxu0
        %739 = vmatprep.subr.mxu0 %v493
        %740 = vmatpush1.msra.mxu0 %v492
        %741 = vmatprep.subr.mxu0 %v497
        %742 = vmatpush1.msra.mxu0 %v496
        %743 = vmatprep.subr.mxu0 %v501
        %744 = vmatpush1.msra.mxu0 %v500
        %745 = vmatprep.subr.mxu0 %v505
        %746 = vmatpush1.msra.mxu0 %v504
        %747 = vmatprep.subr.mxu0 %v509
        %748 = vmatpush1.msra.mxu0 %v508
        %749 = vmatprep.subr.mxu0 %v513
        %750 = vmatpush1.msra.mxu0 %v512
        %751 = vmatprep.subr.mxu0 %v517
        %752 = vmatpush1.msra.mxu0 %v516
        %753 = vmatprep.subr.mxu0 %v521
        %754 = vmatpush1.msra.mxu0 %v520
        %755 = vmatprep.subr.mxu0 %v525
        %756 = vmatpush1.msra.mxu0 %v524
        %757 = vmatprep.subr.mxu0 %v529
        %758 = vmatpush1.msra.mxu0 %v528
        %759 = vmatprep.subr.mxu0 %v533
        %760 = vmatpush1.msra.mxu0 %v532
        %761 = vmatprep.subr.mxu0 %v537
        %762 = vmatpush1.msra.mxu0 %v536
        %763 = vmatprep.subr.mxu0 %v541
        %764 = vmatpush1.msra.mxu0 %v540
        %765 = vmatprep.subr.mxu0 %v545
        %766 = vmatpush1.msra.mxu0 %v544
        %767 = vmatprep.subr.mxu0 %v549
        %768 = vmatpush1.msra.mxu0 %v548
        %769 = vmatprep.subr.mxu0 %v553
        %770 = vmatpush1.msra.mxu0 %v552
        %771 = vmatprep.subr.mxu0 0.0
        %772 = vmatpush1.msra.mxu0 0.0
        %773 = vmatprep.subr.mxu0 0.0
        %774 = vmatpush1.msra.mxu0 0.0
        %775 = vmatprep.subr.mxu0 0.0
        %776 = vmatpush1.msra.mxu0 0.0
        %777 = vmatprep.subr.mxu0 0.0
        %778 = vmatpush1.msra.mxu0 0.0
        %779 = vmatprep.subr.mxu0 0.0
        %780 = vmatpush1.msra.mxu0 0.0
        %781 = vmatprep.subr.mxu0 0.0
        %782 = vmatpush1.msra.mxu0 0.0
        %783 = vmatprep.subr.mxu0 0.0
        %784 = vmatpush1.msra.mxu0 0.0
        %785 = vmatprep.subr.mxu0 0.0
        %786 = vmatpush1.msra.mxu0 0.0
        %787 = vmatprep.subr.mxu0 0.0
        %788 = vmatpush1.msra.mxu0 0.0
        %789 = vmatprep.subr.mxu0 0.0
        %790 = vmatpush1.msra.mxu0 0.0
        %791 = vmatprep.subr.mxu0 0.0
        %792 = vmatpush1.msra.mxu0 0.0
        %793 = vmatprep.subr.mxu0 0.0
        %794 = vmatpush1.msra.mxu0 0.0
        %795 = vmatprep.subr.mxu0 0.0
        %796 = vmatpush1.msra.mxu0 0.0
        %797 = vmatprep.subr.mxu0 0.0
        %798 = vmatpush1.msra.mxu0 0.0
        %799 = vmatprep.subr.mxu0 0.0
        %800 = vmatpush1.msra.mxu0 0.0
        %801 = vmatprep.subr.mxu0 0.0
        %802 = vmatpush1.msra.mxu0 0.0
        %803 = vmatprep.mubr.f32.mxu0 0.0
        %804 = vmatmul.mubr.f32.gmra.mrb[0].mxu0 %v318
        %v805 = vpop.f32.mrb[0].mxu0
        %v806 = vadd.f32 %v645, %v805
        %v807 = vpop.f32.mrb[0].mxu0
        %v808 = vadd.f32 %v647, %v807
        %809 = vmatprep.mubr.f32.mxu0 0.0
        %810 = vmatmul.mubr.f32.gmra.mrb[0].mxu0 %v321
        %v811 = vpop.f32.mrb[0].mxu0
        %v812 = vadd.f32 %v651, %v811
        %v813 = vpop.f32.mrb[0].mxu0
        %v814 = vadd.f32 %v653, %v813
        %815 = vmatprep.mubr.f32.mxu0 0.0
        %816 = vmatmul.mubr.f32.gmra.mrb[0].mxu0 %v324
        %v817 = vpop.f32.mrb[0].mxu0
        %v818 = vadd.f32 %v657, %v817
        %v819 = vpop.f32.mrb[0].mxu0
        %v820 = vadd.f32 %v659, %v819
        %821 = vmatprep.mubr.f32.mxu0 0.0
        %822 = vmatmul.mubr.f32.gmra.mrb[0].mxu0 %v327
        %v823 = vpop.f32.mrb[0].mxu0
        %v824 = vadd.f32 %v663, %v823
        %v825 = vpop.f32.mrb[0].mxu0
        %v826 = vadd.f32 %v665, %v825
        %827 = vmatprep.mubr.f32.mxu0 0.0
        %828 = vmatmul.mubr.f32.gmra.mrb[0].mxu0 %v330
        %v829 = vpop.f32.mrb[0].mxu0
        %v830 = vadd.f32 %v669, %v829
        %v831 = vpop.f32.mrb[0].mxu0
        %v832 = vadd.f32 %v671, %v831
        %833 = vmatprep.mubr.f32.mxu0 0.0
        %834 = vmatmul.mubr.f32.gmra.mrb[0].mxu0 %v333
        %v835 = vpop.f32.mrb[0].mxu0
        %v836 = vadd.f32 %v675, %v835
        %v837 = vpop.f32.mrb[0].mxu0
        %v838 = vadd.f32 %v677, %v837
        %839 = vmatprep.mubr.f32.mxu0 0.0
        %840 = vmatmul.mubr.f32.gmra.mrb[0].mxu0 %v336
        %v841 = vpop.f32.mrb[0].mxu0
        %v842 = vadd.f32 %v681, %v841
        %v843 = vpop.f32.mrb[0].mxu0
        %v844 = vadd.f32 %v683, %v843
        %845 = vmatprep.mubr.f32.mxu0 0.0
        %846 = vmatmul.mubr.f32.gmra.mrb[0].mxu0 %v339
        %v847 = vpop.f32.mrb[0].mxu0
        %v848 = vadd.f32 %v687, %v847
        %v849 = vpop.f32.mrb[0].mxu0
        %v850 = vadd.f32 %v689, %v849
        %851 = vmatprep.mubr.f32.mxu0 0.0
        %852 = vmatmul.mubr.f32.gmra.mrb[0].mxu0 %v342
        %v853 = vpop.f32.mrb[0].mxu0
        %v854 = vadd.f32 %v693, %v853
        %v855 = vpop.f32.mrb[0].mxu0
        %v856 = vadd.f32 %v695, %v855
        %857 = vmatprep.mubr.f32.mxu0 0.0
        %858 = vmatmul.mubr.f32.gmra.mrb[0].mxu0 %v345
        %v859 = vpop.f32.mrb[0].mxu0
        %v860 = vadd.f32 %v699, %v859
        %v861 = vpop.f32.mrb[0].mxu0
        %v862 = vadd.f32 %v701, %v861
        %863 = vmatprep.mubr.f32.mxu0 0.0
        %864 = vmatmul.mubr.f32.gmra.mrb[0].mxu0 %v348
        %v865 = vpop.f32.mrb[0].mxu0
        %v866 = vadd.f32 %v705, %v865
        %v867 = vpop.f32.mrb[0].mxu0
        %v868 = vadd.f32 %v707, %v867
        %869 = vmatprep.mubr.f32.mxu0 0.0
        %870 = vmatmul.mubr.f32.gmra.mrb[0].mxu0 %v351
        %v871 = vpop.f32.mrb[0].mxu0
        %v872 = vadd.f32 %v711, %v871
        %v873 = vpop.f32.mrb[0].mxu0
        %v874 = vadd.f32 %v713, %v873
        %875 = vmatprep.mubr.f32.mxu0 0.0
        %876 = vmatmul.mubr.f32.gmra.mrb[0].mxu0 %v354
        %v877 = vpop.f32.mrb[0].mxu0
        %v878 = vadd.f32 %v717, %v877
        %v879 = vpop.f32.mrb[0].mxu0
        %v880 = vadd.f32 %v719, %v879
        %881 = vmatprep.mubr.f32.mxu0 0.0
        %882 = vmatmul.mubr.f32.gmra.mrb[0].mxu0 %v357
        %v883 = vpop.f32.mrb[0].mxu0
        %v884 = vadd.f32 %v723, %v883
        %v885 = vpop.f32.mrb[0].mxu0
        %v886 = vadd.f32 %v725, %v885
        %887 = vmatprep.mubr.f32.mxu0 0.0
        %888 = vmatmul.mubr.f32.gmra.mrb[0].mxu0 %v360
        %v889 = vpop.f32.mrb[0].mxu0
        %v890 = vadd.f32 %v729, %v889
        %v891 = vpop.f32.mrb[0].mxu0
        %v892 = vadd.f32 %v731, %v891
        %893 = vmatprep.mubr.f32.mxu0 0.0
        %894 = vmatmul.mubr.f32.gmra.mrb[0].mxu0 %v363
        %v895 = vpop.f32.mrb[0].mxu0
        %v896 = vadd.f32 %v735, %v895
        %v897 = vpop.f32.mrb[0].mxu0
        %v898 = vadd.f32 %v737, %v897
        %899 = vdwg.mxu0
        %900 = vmatprep.subr.mxu0 %v367
        %901 = vmatpush1.msra.mxu0 %v366
        %902 = vmatprep.subr.mxu0 %v371
        %903 = vmatpush1.msra.mxu0 %v370
        %904 = vmatprep.subr.mxu0 %v375
        %905 = vmatpush1.msra.mxu0 %v374
        %906 = vmatprep.subr.mxu0 %v379
        %907 = vmatpush1.msra.mxu0 %v378
        %908 = vmatprep.subr.mxu0 %v383
        %909 = vmatpush1.msra.mxu0 %v382
        %910 = vmatprep.subr.mxu0 %v387
        %911 = vmatpush1.msra.mxu0 %v386
        %912 = vmatprep.subr.mxu0 %v391
        %913 = vmatpush1.msra.mxu0 %v390
        %914 = vmatprep.subr.mxu0 %v395
        %915 = vmatpush1.msra.mxu0 %v394
        %916 = vmatprep.subr.mxu0 %v399
        %917 = vmatpush1.msra.mxu0 %v398
        %918 = vmatprep.subr.mxu0 %v403
        %919 = vmatpush1.msra.mxu0 %v402
        %920 = vmatprep.subr.mxu0 %v407
        %921 = vmatpush1.msra.mxu0 %v406
        %922 = vmatprep.subr.mxu0 %v411
        %923 = vmatpush1.msra.mxu0 %v410
        %924 = vmatprep.subr.mxu0 %v415
        %925 = vmatpush1.msra.mxu0 %v414
        %926 = vmatprep.subr.mxu0 %v419
        %927 = vmatpush1.msra.mxu0 %v418
        %928 = vmatprep.subr.mxu0 %v423
        %929 = vmatpush1.msra.mxu0 %v422
        %930 = vmatprep.subr.mxu0 %v427
        %931 = vmatpush1.msra.mxu0 %v426
        %932 = vmatprep.subr.mxu0 %v431
        %933 = vmatpush1.msra.mxu0 %v430
        %934 = vmatprep.subr.mxu0 %v435
        %935 = vmatpush1.msra.mxu0 %v434
        %936 = vmatprep.subr.mxu0 %v439
        %937 = vmatpush1.msra.mxu0 %v438
        %938 = vmatprep.subr.mxu0 %v443
        %939 = vmatpush1.msra.mxu0 %v442
        %940 = vmatprep.subr.mxu0 %v447
        %941 = vmatpush1.msra.mxu0 %v446
        %942 = vmatprep.subr.mxu0 %v451
        %943 = vmatpush1.msra.mxu0 %v450
        %944 = vmatprep.subr.mxu0 %v455
        %945 = vmatpush1.msra.mxu0 %v454
        %946 = vmatprep.subr.mxu0 %v459
        %947 = vmatpush1.msra.mxu0 %v458
        %948 = vmatprep.subr.mxu0 %v463
        %949 = vmatpush1.msra.mxu0 %v462
        %950 = vmatprep.subr.mxu0 %v467
        %951 = vmatpush1.msra.mxu0 %v466
        %952 = vmatprep.subr.mxu0 %v471
        %953 = vmatpush1.msra.mxu0 %v470
        %954 = vmatprep.subr.mxu0 %v475
        %955 = vmatpush1.msra.mxu0 %v474
        %956 = vmatprep.subr.mxu0 %v479
        %957 = vmatpush1.msra.mxu0 %v478
        %958 = vmatprep.subr.mxu0 %v483
        %959 = vmatpush1.msra.mxu0 %v482
        %960 = vmatprep.subr.mxu0 %v487
        %961 = vmatpush1.msra.mxu0 %v486
        %962 = vmatprep.subr.mxu0 %v491
        %963 = vmatpush1.msra.mxu0 %v490
        %964 = vmatprep.mubr.f32.mxu0 %v317
        %965 = vmatmul.mubr.f32.gmra.mrb[0].mxu0 %v316
        %v966 = vpop.f32.mrb[0].mxu0
        %v967 = vadd.f32 %v569, %v966
        %v968 = vpop.f32.mrb[0].mxu0
        %v969 = vadd.f32 %v573, %v968
        %970 = vmatprep.mubr.f32.mxu0 %v320
        %971 = vmatmul.mubr.f32.gmra.mrb[0].mxu0 %v319
        %v972 = vpop.f32.mrb[0].mxu0
        %v973 = vadd.f32 %v569, %v972
        %v974 = vpop.f32.mrb[0].mxu0
        %v975 = vadd.f32 %v573, %v974
        %976 = vmatprep.mubr.f32.mxu0 %v323
        %977 = vmatmul.mubr.f32.gmra.mrb[0].mxu0 %v322
        %v978 = vpop.f32.mrb[0].mxu0
        %v979 = vadd.f32 %v569, %v978
        %v980 = vpop.f32.mrb[0].mxu0
        %v981 = vadd.f32 %v573, %v980
        %982 = vmatprep.mubr.f32.mxu0 %v326
        %983 = vmatmul.mubr.f32.gmra.mrb[0].mxu0 %v325
        %v984 = vpop.f32.mrb[0].mxu0
        %v985 = vadd.f32 %v569, %v984
        %v986 = vpop.f32.mrb[0].mxu0
        %v987 = vadd.f32 %v573, %v986
        %988 = vmatprep.mubr.f32.mxu0 %v329
        %989 = vmatmul.mubr.f32.gmra.mrb[0].mxu0 %v328
        %v990 = vpop.f32.mrb[0].mxu0
        %v991 = vadd.f32 %v569, %v990
        %v992 = vpop.f32.mrb[0].mxu0
        %v993 = vadd.f32 %v573, %v992
        %994 = vmatprep.mubr.f32.mxu0 %v332
        %995 = vmatmul.mubr.f32.gmra.mrb[0].mxu0 %v331
        %v996 = vpop.f32.mrb[0].mxu0
        %v997 = vadd.f32 %v569, %v996
        %v998 = vpop.f32.mrb[0].mxu0
        %v999 = vadd.f32 %v573, %v998
        %1000 = vmatprep.mubr.f32.mxu0 %v335
        %1001 = vmatmul.mubr.f32.gmra.mrb[0].mxu0 %v334
        %v1002 = vpop.f32.mrb[0].mxu0
        %v1003 = vadd.f32 %v569, %v1002
        %v1004 = vpop.f32.mrb[0].mxu0
        %v1005 = vadd.f32 %v573, %v1004
        %1006 = vmatprep.mubr.f32.mxu0 %v338
        %1007 = vmatmul.mubr.f32.gmra.mrb[0].mxu0 %v337
        %v1008 = vpop.f32.mrb[0].mxu0
        %v1009 = vadd.f32 %v569, %v1008
        %v1010 = vpop.f32.mrb[0].mxu0
        %v1011 = vadd.f32 %v573, %v1010
        %1012 = vmatprep.mubr.f32.mxu0 %v341
        %1013 = vmatmul.mubr.f32.gmra.mrb[0].mxu0 %v340
        %v1014 = vpop.f32.mrb[0].mxu0
        %v1015 = vadd.f32 %v569, %v1014
        %v1016 = vpop.f32.mrb[0].mxu0
        %v1017 = vadd.f32 %v573, %v1016
        %1018 = vmatprep.mubr.f32.mxu0 %v344
        %1019 = vmatmul.mubr.f32.gmra.mrb[0].mxu0 %v343
        %v1020 = vpop.f32.mrb[0].mxu0
        %v1021 = vadd.f32 %v569, %v1020
        %v1022 = vpop.f32.mrb[0].mxu0
        %v1023 = vadd.f32 %v573, %v1022
        %1024 = vmatprep.mubr.f32.mxu0 %v347
        %1025 = vmatmul.mubr.f32.gmra.mrb[0].mxu0 %v346
        %v1026 = vpop.f32.mrb[0].mxu0
        %v1027 = vadd.f32 %v569, %v1026
        %v1028 = vpop.f32.mrb[0].mxu0
        %v1029 = vadd.f32 %v573, %v1028
        %1030 = vmatprep.mubr.f32.mxu0 %v350
        %1031 = vmatmul.mubr.f32.gmra.mrb[0].mxu0 %v349
        %v1032 = vpop.f32.mrb[0].mxu0
        %v1033 = vadd.f32 %v569, %v1032
        %v1034 = vpop.f32.mrb[0].mxu0
        %v1035 = vadd.f32 %v573, %v1034
        %1036 = vmatprep.mubr.f32.mxu0 %v353
        %1037 = vmatmul.mubr.f32.gmra.mrb[0].mxu0 %v352
        %v1038 = vpop.f32.mrb[0].mxu0
        %v1039 = vadd.f32 %v569, %v1038
        %v1040 = vpop.f32.mrb[0].mxu0
        %v1041 = vadd.f32 %v573, %v1040
        %1042 = vmatprep.mubr.f32.mxu0 %v356
        %1043 = vmatmul.mubr.f32.gmra.mrb[0].mxu0 %v355
        %v1044 = vpop.f32.mrb[0].mxu0
        %v1045 = vadd.f32 %v569, %v1044
        %v1046 = vpop.f32.mrb[0].mxu0
        %v1047 = vadd.f32 %v573, %v1046
        %1048 = vmatprep.mubr.f32.mxu0 %v359
        %1049 = vmatmul.mubr.f32.gmra.mrb[0].mxu0 %v358
        %v1050 = vpop.f32.mrb[0].mxu0
        %v1051 = vadd.f32 %v569, %v1050
        %v1052 = vpop.f32.mrb[0].mxu0
        %v1053 = vadd.f32 %v573, %v1052
        %1054 = vmatprep.mubr.f32.mxu0 %v362
        %1055 = vmatmul.mubr.f32.gmra.mrb[0].mxu0 %v361
        %v1056 = vpop.f32.mrb[0].mxu0
        %v1057 = vadd.f32 %v569, %v1056
        %v1058 = vpop.f32.mrb[0].mxu0
        %v1059 = vadd.f32 %v573, %v1058
        %1060 = vdwg.mxu0
        %1061 = vmatprep.subr.mxu0 %v495
        %1062 = vmatpush1.msra.mxu0 %v494
        %1063 = vmatprep.subr.mxu0 %v499
        %1064 = vmatpush1.msra.mxu0 %v498
        %1065 = vmatprep.subr.mxu0 %v503
        %1066 = vmatpush1.msra.mxu0 %v502
        %1067 = vmatprep.subr.mxu0 %v507
        %1068 = vmatpush1.msra.mxu0 %v506
        %1069 = vmatprep.subr.mxu0 %v511
        %1070 = vmatpush1.msra.mxu0 %v510
        %1071 = vmatprep.subr.mxu0 %v515
        %1072 = vmatpush1.msra.mxu0 %v514
        %1073 = vmatprep.subr.mxu0 %v519
        %1074 = vmatpush1.msra.mxu0 %v518
        %1075 = vmatprep.subr.mxu0 %v523
        %1076 = vmatpush1.msra.mxu0 %v522
        %1077 = vmatprep.subr.mxu0 %v527
        %1078 = vmatpush1.msra.mxu0 %v526
        %1079 = vmatprep.subr.mxu0 %v531
        %1080 = vmatpush1.msra.mxu0 %v530
        %1081 = vmatprep.subr.mxu0 %v535
        %1082 = vmatpush1.msra.mxu0 %v534
        %1083 = vmatprep.subr.mxu0 %v539
        %1084 = vmatpush1.msra.mxu0 %v538
        %1085 = vmatprep.subr.mxu0 %v543
        %1086 = vmatpush1.msra.mxu0 %v542
        %1087 = vmatprep.subr.mxu0 %v547
        %1088 = vmatpush1.msra.mxu0 %v546
        %1089 = vmatprep.subr.mxu0 %v551
        %1090 = vmatpush1.msra.mxu0 %v550
        %1091 = vmatprep.subr.mxu0 %v555
        %1092 = vmatpush1.msra.mxu0 %v554
        %1093 = vmatprep.subr.mxu0 0.0
        %1094 = vmatpush1.msra.mxu0 0.0
        %1095 = vmatprep.subr.mxu0 0.0
        %1096 = vmatpush1.msra.mxu0 0.0
        %1097 = vmatprep.subr.mxu0 0.0
        %1098 = vmatpush1.msra.mxu0 0.0
        %1099 = vmatprep.subr.mxu0 0.0
        %1100 = vmatpush1.msra.mxu0 0.0
        %1101 = vmatprep.subr.mxu0 0.0
        %1102 = vmatpush1.msra.mxu0 0.0
        %1103 = vmatprep.subr.mxu0 0.0
        %1104 = vmatpush1.msra.mxu0 0.0
        %1105 = vmatprep.subr.mxu0 0.0
        %1106 = vmatpush1.msra.mxu0 0.0
        %1107 = vmatprep.subr.mxu0 0.0
        %1108 = vmatpush1.msra.mxu0 0.0
        %1109 = vmatprep.subr.mxu0 0.0
        %1110 = vmatpush1.msra.mxu0 0.0
        %1111 = vmatprep.subr.mxu0 0.0
        %1112 = vmatpush1.msra.mxu0 0.0
        %1113 = vmatprep.subr.mxu0 0.0
        %1114 = vmatpush1.msra.mxu0 0.0
        %1115 = vmatprep.subr.mxu0 0.0
        %1116 = vmatpush1.msra.mxu0 0.0
        %1117 = vmatprep.subr.mxu0 0.0
        %1118 = vmatpush1.msra.mxu0 0.0
        %1119 = vmatprep.subr.mxu0 0.0
        %1120 = vmatpush1.msra.mxu0 0.0
        %1121 = vmatprep.subr.mxu0 0.0
        %1122 = vmatpush1.msra.mxu0 0.0
        %1123 = vmatprep.subr.mxu0 0.0
        %1124 = vmatpush1.msra.mxu0 0.0
        %1125 = vmatprep.mubr.f32.mxu0 0.0
        %1126 = vmatmul.mubr.f32.gmra.mrb[0].mxu0 %v318
        %v1127 = vpop.f32.mrb[0].mxu0
        %v1128 = vadd.f32 %v967, %v1127
        %v1129 = vpop.f32.mrb[0].mxu0
        %v1130 = vadd.f32 %v969, %v1129
        %1131 = vmatprep.mubr.f32.mxu0 0.0
        %1132 = vmatmul.mubr.f32.gmra.mrb[0].mxu0 %v321
        %v1133 = vpop.f32.mrb[0].mxu0
        %v1134 = vadd.f32 %v973, %v1133
        %v1135 = vpop.f32.mrb[0].mxu0
        %v1136 = vadd.f32 %v975, %v1135
        %1137 = vmatprep.mubr.f32.mxu0 0.0
        %1138 = vmatmul.mubr.f32.gmra.mrb[0].mxu0 %v324
        %v1139 = vpop.f32.mrb[0].mxu0
        %v1140 = vadd.f32 %v979, %v1139
        %v1141 = vpop.f32.mrb[0].mxu0
        %v1142 = vadd.f32 %v981, %v1141
        %1143 = vmatprep.mubr.f32.mxu0 0.0
        %1144 = vmatmul.mubr.f32.gmra.mrb[0].mxu0 %v327
        %v1145 = vpop.f32.mrb[0].mxu0
        %v1146 = vadd.f32 %v985, %v1145
        %v1147 = vpop.f32.mrb[0].mxu0
        %v1148 = vadd.f32 %v987, %v1147
        %1149 = vmatprep.mubr.f32.mxu0 0.0
        %1150 = vmatmul.mubr.f32.gmra.mrb[0].mxu0 %v330
        %v1151 = vpop.f32.mrb[0].mxu0
        %v1152 = vadd.f32 %v991, %v1151
        %v1153 = vpop.f32.mrb[0].mxu0
        %v1154 = vadd.f32 %v993, %v1153
        %1155 = vmatprep.mubr.f32.mxu0 0.0
        %1156 = vmatmul.mubr.f32.gmra.mrb[0].mxu0 %v333
        %v1157 = vpop.f32.mrb[0].mxu0
        %v1158 = vadd.f32 %v997, %v1157
        %v1159 = vpop.f32.mrb[0].mxu0
        %v1160 = vadd.f32 %v999, %v1159
        %1161 = vmatprep.mubr.f32.mxu0 0.0
        %1162 = vmatmul.mubr.f32.gmra.mrb[0].mxu0 %v336
        %v1163 = vpop.f32.mrb[0].mxu0
        %v1164 = vadd.f32 %v1003, %v1163
        %v1165 = vpop.f32.mrb[0].mxu0
        %v1166 = vadd.f32 %v1005, %v1165
        %1167 = vmatprep.mubr.f32.mxu0 0.0
        %1168 = vmatmul.mubr.f32.gmra.mrb[0].mxu0 %v339
        %v1169 = vpop.f32.mrb[0].mxu0
        %v1170 = vadd.f32 %v1009, %v1169
        %v1171 = vpop.f32.mrb[0].mxu0
        %v1172 = vadd.f32 %v1011, %v1171
        %1173 = vmatprep.mubr.f32.mxu0 0.0
        %1174 = vmatmul.mubr.f32.gmra.mrb[0].mxu0 %v342
        %v1175 = vpop.f32.mrb[0].mxu0
        %v1176 = vadd.f32 %v1015, %v1175
        %v1177 = vpop.f32.mrb[0].mxu0
        %v1178 = vadd.f32 %v1017, %v1177
        %1179 = vmatprep.mubr.f32.mxu0 0.0
        %1180 = vmatmul.mubr.f32.gmra.mrb[0].mxu0 %v345
        %v1181 = vpop.f32.mrb[0].mxu0
        %v1182 = vadd.f32 %v1021, %v1181
        %v1183 = vpop.f32.mrb[0].mxu0
        %v1184 = vadd.f32 %v1023, %v1183
        %1185 = vmatprep.mubr.f32.mxu0 0.0
        %1186 = vmatmul.mubr.f32.gmra.mrb[0].mxu0 %v348
        %v1187 = vpop.f32.mrb[0].mxu0
        %v1188 = vadd.f32 %v1027, %v1187
        %v1189 = vpop.f32.mrb[0].mxu0
        %v1190 = vadd.f32 %v1029, %v1189
        %1191 = vmatprep.mubr.f32.mxu0 0.0
        %1192 = vmatmul.mubr.f32.gmra.mrb[0].mxu0 %v351
        %v1193 = vpop.f32.mrb[0].mxu0
        %v1194 = vadd.f32 %v1033, %v1193
        %v1195 = vpop.f32.mrb[0].mxu0
        %v1196 = vadd.f32 %v1035, %v1195
        %1197 = vmatprep.mubr.f32.mxu0 0.0
        %1198 = vmatmul.mubr.f32.gmra.mrb[0].mxu0 %v354
        %v1199 = vpop.f32.mrb[0].mxu0
        %v1200 = vadd.f32 %v1039, %v1199
        %v1201 = vpop.f32.mrb[0].mxu0
        %v1202 = vadd.f32 %v1041, %v1201
        %1203 = vmatprep.mubr.f32.mxu0 0.0
        %1204 = vmatmul.mubr.f32.gmra.mrb[0].mxu0 %v357
        %v1205 = vpop.f32.mrb[0].mxu0
        %v1206 = vadd.f32 %v1045, %v1205
        %v1207 = vpop.f32.mrb[0].mxu0
        %v1208 = vadd.f32 %v1047, %v1207
        %1209 = vmatprep.mubr.f32.mxu0 0.0
        %1210 = vmatmul.mubr.f32.gmra.mrb[0].mxu0 %v360
        %v1211 = vpop.f32.mrb[0].mxu0
        %v1212 = vadd.f32 %v1051, %v1211
        %v1213 = vpop.f32.mrb[0].mxu0
        %v1214 = vadd.f32 %v1053, %v1213
        %1215 = vmatprep.mubr.f32.mxu0 0.0
        %1216 = vmatmul.mubr.f32.gmra.mrb[0].mxu0 %v363
        %v1217 = vpop.f32.mrb[0].mxu0
        %v1218 = vadd.f32 %v1057, %v1217
        %v1219 = vpop.f32.mrb[0].mxu0
        %v1220 = vadd.f32 %v1059, %v1219
        %1221 = vdwg.mxu0
        %v1222 = vmax.f32 %v806, 0.0
        %v1223 = vmax.f32 %v808, 0.0
        %v1224 = vmax.f32 %v1128, 0.0
        %v1225 = vmax.f32 %v1130, 0.0
        %v1226 = vmax.f32 %v812, 0.0
        %v1227 = vmax.f32 %v814, 0.0
        %v1228 = vmax.f32 %v1134, 0.0
        %v1229 = vmax.f32 %v1136, 0.0
        %v1230 = vmax.f32 %v818, 0.0
        %v1231 = vmax.f32 %v820, 0.0
        %v1232 = vmax.f32 %v1140, 0.0
        %v1233 = vmax.f32 %v1142, 0.0
        %v1234 = vmax.f32 %v824, 0.0
        %v1235 = vmax.f32 %v826, 0.0
        %v1236 = vmax.f32 %v1146, 0.0
        %v1237 = vmax.f32 %v1148, 0.0
        %v1238 = vmax.f32 %v830, 0.0
        %v1239 = vmax.f32 %v832, 0.0
        %v1240 = vmax.f32 %v1152, 0.0
        %v1241 = vmax.f32 %v1154, 0.0
        %v1242 = vmax.f32 %v836, 0.0
        %v1243 = vmax.f32 %v838, 0.0
        %v1244 = vmax.f32 %v1158, 0.0
        %v1245 = vmax.f32 %v1160, 0.0
        %v1246 = vmax.f32 %v842, 0.0
        %v1247 = vmax.f32 %v844, 0.0
        %v1248 = vmax.f32 %v1164, 0.0
        %v1249 = vmax.f32 %v1166, 0.0
        %v1250 = vmax.f32 %v848, 0.0
        %v1251 = vmax.f32 %v850, 0.0
        %v1252 = vmax.f32 %v1170, 0.0
        %v1253 = vmax.f32 %v1172, 0.0
        %v1254 = vmax.f32 %v854, 0.0
        %v1255 = vmax.f32 %v856, 0.0
        %v1256 = vmax.f32 %v1176, 0.0
        %v1257 = vmax.f32 %v1178, 0.0
        %v1258 = vmax.f32 %v860, 0.0
        %v1259 = vmax.f32 %v862, 0.0
        %v1260 = vmax.f32 %v1182, 0.0
        %v1261 = vmax.f32 %v1184, 0.0
        %v1262 = vmax.f32 %v866, 0.0
        %v1263 = vmax.f32 %v868, 0.0
        %v1264 = vmax.f32 %v1188, 0.0
        %v1265 = vmax.f32 %v1190, 0.0
        %v1266 = vmax.f32 %v872, 0.0
        %v1267 = vmax.f32 %v874, 0.0
        %v1268 = vmax.f32 %v1194, 0.0
        %v1269 = vmax.f32 %v1196, 0.0
        %v1270 = vmax.f32 %v878, 0.0
        %v1271 = vmax.f32 %v880, 0.0
        %v1272 = vmax.f32 %v1200, 0.0
        %v1273 = vmax.f32 %v1202, 0.0
        %v1274 = vmax.f32 %v884, 0.0
        %v1275 = vmax.f32 %v886, 0.0
        %v1276 = vmax.f32 %v1206, 0.0
        %v1277 = vmax.f32 %v1208, 0.0
        %v1278 = vmax.f32 %v890, 0.0
        %v1279 = vmax.f32 %v892, 0.0
        %v1280 = vmax.f32 %v1212, 0.0
        %v1281 = vmax.f32 %v1214, 0.0
        %v1282 = vmax.f32 %v896, 0.0
        %v1283 = vmax.f32 %v898, 0.0
        %v1284 = vmax.f32 %v1218, 0.0
        %v1285 = vmax.f32 %v1220, 0.0
        %v1286 = vld [vmem:[#allocation7] sm:$0xff]
        %v1287 = vld [vmem:[#allocation7 + $0x8] sm:$0xff]
        %v1288 = vld [vmem:[#allocation7 + $0x10] sm:$0xff]
        %v1289 = vld [vmem:[#allocation7 + $0x18] sm:$0xff]
        %v1290 = vld [vmem:[#allocation7 + $0x20] sm:$0xff]
        %v1291 = vld [vmem:[#allocation7 + $0x28] sm:$0xff]
        %v1292 = vld [vmem:[#allocation7 + $0x30] sm:$0xff]
        %v1293 = vld [vmem:[#allocation7 + $0x38] sm:$0xff]
        %v1294 = vmul.f32 %v1222, %v1286
        %v1295 = vmul.f32 %v1223, %v1287
        %v1296 = vmul.f32 %v1224, %v1288
        %v1297 = vmul.f32 %v1225, %v1289
        %v1298 = vmul.f32 %v1226, %v1290
        %v1299 = vmul.f32 %v1227, %v1291
        %v1300 = vmul.f32 %v1228, %v1292
        %v1301 = vmul.f32 %v1229, %v1293
        %v1302 = vmul.f32 %v1230, %v1286
        %v1303 = vmul.f32 %v1231, %v1287
        %v1304 = vmul.f32 %v1232, %v1288
        %v1305 = vmul.f32 %v1233, %v1289
        %v1306 = vmul.f32 %v1234, %v1290
        %v1307 = vmul.f32 %v1235, %v1291
        %v1308 = vmul.f32 %v1236, %v1292
        %v1309 = vmul.f32 %v1237, %v1293
        %v1310 = vmul.f32 %v1238, %v1286
        %v1311 = vmul.f32 %v1239, %v1287
        %v1312 = vmul.f32 %v1240, %v1288
        %v1313 = vmul.f32 %v1241, %v1289
        %v1314 = vmul.f32 %v1242, %v1290
        %v1315 = vmul.f32 %v1243, %v1291
        %v1316 = vmul.f32 %v1244, %v1292
        %v1317 = vmul.f32 %v1245, %v1293
        %v1318 = vmul.f32 %v1246, %v1286
        %v1319 = vmul.f32 %v1247, %v1287
        %v1320 = vmul.f32 %v1248, %v1288
        %v1321 = vmul.f32 %v1249, %v1289
        %v1322 = vmul.f32 %v1250, %v1290
        %v1323 = vmul.f32 %v1251, %v1291
        %v1324 = vmul.f32 %v1252, %v1292
        %v1325 = vmul.f32 %v1253, %v1293
        %v1326 = vmul.f32 %v1254, %v1286
        %v1327 = vmul.f32 %v1255, %v1287
        %v1328 = vmul.f32 %v1256, %v1288
        %v1329 = vmul.f32 %v1257, %v1289
        %v1330 = vmul.f32 %v1258, %v1290
        %v1331 = vmul.f32 %v1259, %v1291
        %v1332 = vmul.f32 %v1260, %v1292
        %v1333 = vmul.f32 %v1261, %v1293
        %v1334 = vmul.f32 %v1262, %v1286
        %v1335 = vmul.f32 %v1263, %v1287
        %v1336 = vmul.f32 %v1264, %v1288
        %v1337 = vmul.f32 %v1265, %v1289
        %v1338 = vmul.f32 %v1266, %v1290
        %v1339 = vmul.f32 %v1267, %v1291
        %v1340 = vmul.f32 %v1268, %v1292
        %v1341 = vmul.f32 %v1269, %v1293
        %v1342 = vmul.f32 %v1270, %v1286
        %v1343 = vmul.f32 %v1271, %v1287
        %v1344 = vmul.f32 %v1272, %v1288
        %v1345 = vmul.f32 %v1273, %v1289
        %v1346 = vmul.f32 %v1274, %v1290
        %v1347 = vmul.f32 %v1275, %v1291
        %v1348 = vmul.f32 %v1276, %v1292
        %v1349 = vmul.f32 %v1277, %v1293
        %v1350 = vmul.f32 %v1278, %v1286
        %v1351 = vmul.f32 %v1279, %v1287
        %v1352 = vmul.f32 %v1280, %v1288
        %v1353 = vmul.f32 %v1281, %v1289
        %v1354 = vmul.f32 %v1282, %v1290
        %v1355 = vmul.f32 %v1283, %v1291
        %v1356 = vmul.f32 %v1284, %v1292
        %v1357 = vmul.f32 %v1285, %v1293
        %v1358 = vmax.f32 %v1294, %v1298
        %v1359 = vrot.slane %v1358, 4
        %v1360 = vmax.f32 %v1358, %v1359
        %v1361 = vrot.slane %v1360, 2
        %v1362 = vmax.f32 %v1360, %v1361
        %v1363 = vrot.slane %v1362, 1
        %v1364 = vmax.f32 %v1362, %v1363
        %v1365 = vmax.f32 %v1295, %v1299
        %v1366 = vrot.slane %v1365, 4
        %v1367 = vmax.f32 %v1365, %v1366
        %v1368 = vrot.slane %v1367, 2
        %v1369 = vmax.f32 %v1367, %v1368
        %v1370 = vrot.slane %v1369, 1
        %v1371 = vmax.f32 %v1369, %v1370
        %v1372 = vmax.f32 %v1296, %v1300
        %v1373 = vrot.slane %v1372, 4
        %v1374 = vmax.f32 %v1372, %v1373
        %v1375 = vrot.slane %v1374, 2
        %v1376 = vmax.f32 %v1374, %v1375
        %v1377 = vrot.slane %v1376, 1
        %v1378 = vmax.f32 %v1376, %v1377
        %v1379 = vmax.f32 %v1297, %v1301
        %v1380 = vrot.slane %v1379, 4
        %v1381 = vmax.f32 %v1379, %v1380
        %v1382 = vrot.slane %v1381, 2
        %v1383 = vmax.f32 %v1381, %v1382
        %v1384 = vrot.slane %v1383, 1
        %v1385 = vmax.f32 %v1383, %v1384
        %v1386 = vmax.f32 %v1302, %v1306
        %v1387 = vrot.slane %v1386, 4
        %v1388 = vmax.f32 %v1386, %v1387
        %v1389 = vrot.slane %v1388, 2
        %v1390 = vmax.f32 %v1388, %v1389
        %v1391 = vrot.slane %v1390, 1
        %v1392 = vmax.f32 %v1390, %v1391
        %v1393 = vmax.f32 %v1303, %v1307
        %v1394 = vrot.slane %v1393, 4
        %v1395 = vmax.f32 %v1393, %v1394
        %v1396 = vrot.slane %v1395, 2
        %v1397 = vmax.f32 %v1395, %v1396
        %v1398 = vrot.slane %v1397, 1
        %v1399 = vmax.f32 %v1397, %v1398
        %v1400 = vmax.f32 %v1304, %v1308
        %v1401 = vrot.slane %v1400, 4
        %v1402 = vmax.f32 %v1400, %v1401
        %v1403 = vrot.slane %v1402, 2
        %v1404 = vmax.f32 %v1402, %v1403
        %v1405 = vrot.slane %v1404, 1
        %v1406 = vmax.f32 %v1404, %v1405
        %v1407 = vmax.f32 %v1305, %v1309
        %v1408 = vrot.slane %v1407, 4
        %v1409 = vmax.f32 %v1407, %v1408
        %v1410 = vrot.slane %v1409, 2
        %v1411 = vmax.f32 %v1409, %v1410
        %v1412 = vrot.slane %v1411, 1
        %v1413 = vmax.f32 %v1411, %v1412
        %v1414 = vmax.f32 %v1310, %v1314
        %v1415 = vrot.slane %v1414, 4
        %v1416 = vmax.f32 %v1414, %v1415
        %v1417 = vrot.slane %v1416, 2
        %v1418 = vmax.f32 %v1416, %v1417
        %v1419 = vrot.slane %v1418, 1
        %v1420 = vmax.f32 %v1418, %v1419
        %v1421 = vmax.f32 %v1311, %v1315
        %v1422 = vrot.slane %v1421, 4
        %v1423 = vmax.f32 %v1421, %v1422
        %v1424 = vrot.slane %v1423, 2
        %v1425 = vmax.f32 %v1423, %v1424
        %v1426 = vrot.slane %v1425, 1
        %v1427 = vmax.f32 %v1425, %v1426
        %v1428 = vmax.f32 %v1312, %v1316
        %v1429 = vrot.slane %v1428, 4
        %v1430 = vmax.f32 %v1428, %v1429
        %v1431 = vrot.slane %v1430, 2
        %v1432 = vmax.f32 %v1430, %v1431
        %v1433 = vrot.slane %v1432, 1
        %v1434 = vmax.f32 %v1432, %v1433
        %v1435 = vmax.f32 %v1313, %v1317
        %v1436 = vrot.slane %v1435, 4
        %v1437 = vmax.f32 %v1435, %v1436
        %v1438 = vrot.slane %v1437, 2
        %v1439 = vmax.f32 %v1437, %v1438
        %v1440 = vrot.slane %v1439, 1
        %v1441 = vmax.f32 %v1439, %v1440
        %v1442 = vmax.f32 %v1318, %v1322
        %v1443 = vrot.slane %v1442, 4
        %v1444 = vmax.f32 %v1442, %v1443
        %v1445 = vrot.slane %v1444, 2
        %v1446 = vmax.f32 %v1444, %v1445
        %v1447 = vrot.slane %v1446, 1
        %v1448 = vmax.f32 %v1446, %v1447
        %v1449 = vmax.f32 %v1319, %v1323
        %v1450 = vrot.slane %v1449, 4
        %v1451 = vmax.f32 %v1449, %v1450
        %v1452 = vrot.slane %v1451, 2
        %v1453 = vmax.f32 %v1451, %v1452
        %v1454 = vrot.slane %v1453, 1
        %v1455 = vmax.f32 %v1453, %v1454
        %v1456 = vmax.f32 %v1320, %v1324
        %v1457 = vrot.slane %v1456, 4
        %v1458 = vmax.f32 %v1456, %v1457
        %v1459 = vrot.slane %v1458, 2
        %v1460 = vmax.f32 %v1458, %v1459
        %v1461 = vrot.slane %v1460, 1
        %v1462 = vmax.f32 %v1460, %v1461
        %v1463 = vmax.f32 %v1321, %v1325
        %v1464 = vrot.slane %v1463, 4
        %v1465 = vmax.f32 %v1463, %v1464
        %v1466 = vrot.slane %v1465, 2
        %v1467 = vmax.f32 %v1465, %v1466
        %v1468 = vrot.slane %v1467, 1
        %v1469 = vmax.f32 %v1467, %v1468
        %v1470 = vmax.f32 %v1326, %v1330
        %v1471 = vrot.slane %v1470, 4
        %v1472 = vmax.f32 %v1470, %v1471
        %v1473 = vrot.slane %v1472, 2
        %v1474 = vmax.f32 %v1472, %v1473
        %v1475 = vrot.slane %v1474, 1
        %v1476 = vmax.f32 %v1474, %v1475
        %v1477 = vmax.f32 %v1327, %v1331
        %v1478 = vrot.slane %v1477, 4
        %v1479 = vmax.f32 %v1477, %v1478
        %v1480 = vrot.slane %v1479, 2
        %v1481 = vmax.f32 %v1479, %v1480
        %v1482 = vrot.slane %v1481, 1
        %v1483 = vmax.f32 %v1481, %v1482
        %v1484 = vmax.f32 %v1328, %v1332
        %v1485 = vrot.slane %v1484, 4
        %v1486 = vmax.f32 %v1484, %v1485
        %v1487 = vrot.slane %v1486, 2
        %v1488 = vmax.f32 %v1486, %v1487
        %v1489 = vrot.slane %v1488, 1
        %v1490 = vmax.f32 %v1488, %v1489
        %v1491 = vmax.f32 %v1329, %v1333
        %v1492 = vrot.slane %v1491, 4
        %v1493 = vmax.f32 %v1491, %v1492
        %v1494 = vrot.slane %v1493, 2
        %v1495 = vmax.f32 %v1493, %v1494
        %v1496 = vrot.slane %v1495, 1
        %v1497 = vmax.f32 %v1495, %v1496
        %v1498 = vmax.f32 %v1334, %v1338
        %v1499 = vrot.slane %v1498, 4
        %v1500 = vmax.f32 %v1498, %v1499
        %v1501 = vrot.slane %v1500, 2
        %v1502 = vmax.f32 %v1500, %v1501
        %v1503 = vrot.slane %v1502, 1
        %v1504 = vmax.f32 %v1502, %v1503
        %v1505 = vmax.f32 %v1335, %v1339
        %v1506 = vrot.slane %v1505, 4
        %v1507 = vmax.f32 %v1505, %v1506
        %v1508 = vrot.slane %v1507, 2
        %v1509 = vmax.f32 %v1507, %v1508
        %v1510 = vrot.slane %v1509, 1
        %v1511 = vmax.f32 %v1509, %v1510
        %v1512 = vmax.f32 %v1336, %v1340
        %v1513 = vrot.slane %v1512, 4
        %v1514 = vmax.f32 %v1512, %v1513
        %v1515 = vrot.slane %v1514, 2
        %v1516 = vmax.f32 %v1514, %v1515
        %v1517 = vrot.slane %v1516, 1
        %v1518 = vmax.f32 %v1516, %v1517
        %v1519 = vmax.f32 %v1337, %v1341
        %v1520 = vrot.slane %v1519, 4
        %v1521 = vmax.f32 %v1519, %v1520
        %v1522 = vrot.slane %v1521, 2
        %v1523 = vmax.f32 %v1521, %v1522
        %v1524 = vrot.slane %v1523, 1
        %v1525 = vmax.f32 %v1523, %v1524
        %v1526 = vmax.f32 %v1342, %v1346
        %v1527 = vrot.slane %v1526, 4
        %v1528 = vmax.f32 %v1526, %v1527
        %v1529 = vrot.slane %v1528, 2
        %v1530 = vmax.f32 %v1528, %v1529
        %v1531 = vrot.slane %v1530, 1
        %v1532 = vmax.f32 %v1530, %v1531
        %v1533 = vmax.f32 %v1343, %v1347
        %v1534 = vrot.slane %v1533, 4
        %v1535 = vmax.f32 %v1533, %v1534
        %v1536 = vrot.slane %v1535, 2
        %v1537 = vmax.f32 %v1535, %v1536
        %v1538 = vrot.slane %v1537, 1
        %v1539 = vmax.f32 %v1537, %v1538
        %v1540 = vmax.f32 %v1344, %v1348
        %v1541 = vrot.slane %v1540, 4
        %v1542 = vmax.f32 %v1540, %v1541
        %v1543 = vrot.slane %v1542, 2
        %v1544 = vmax.f32 %v1542, %v1543
        %v1545 = vrot.slane %v1544, 1
        %v1546 = vmax.f32 %v1544, %v1545
        %v1547 = vmax.f32 %v1345, %v1349
        %v1548 = vrot.slane %v1547, 4
        %v1549 = vmax.f32 %v1547, %v1548
        %v1550 = vrot.slane %v1549, 2
        %v1551 = vmax.f32 %v1549, %v1550
        %v1552 = vrot.slane %v1551, 1
        %v1553 = vmax.f32 %v1551, %v1552
        %v1554 = vmax.f32 %v1350, %v1354
        %v1555 = vrot.slane %v1554, 4
        %v1556 = vmax.f32 %v1554, %v1555
        %v1557 = vrot.slane %v1556, 2
        %v1558 = vmax.f32 %v1556, %v1557
        %v1559 = vrot.slane %v1558, 1
        %v1560 = vmax.f32 %v1558, %v1559
        %v1561 = vmax.f32 %v1351, %v1355
        %v1562 = vrot.slane %v1561, 4
        %v1563 = vmax.f32 %v1561, %v1562
        %v1564 = vrot.slane %v1563, 2
        %v1565 = vmax.f32 %v1563, %v1564
        %v1566 = vrot.slane %v1565, 1
        %v1567 = vmax.f32 %v1565, %v1566
        %v1568 = vmax.f32 %v1352, %v1356
        %v1569 = vrot.slane %v1568, 4
        %v1570 = vmax.f32 %v1568, %v1569
        %v1571 = vrot.slane %v1570, 2
        %v1572 = vmax.f32 %v1570, %v1571
        %v1573 = vrot.slane %v1572, 1
        %v1574 = vmax.f32 %v1572, %v1573
        %v1575 = vmax.f32 %v1353, %v1357
        %v1576 = vrot.slane %v1575, 4
        %v1577 = vmax.f32 %v1575, %v1576
        %v1578 = vrot.slane %v1577, 2
        %v1579 = vmax.f32 %v1577, %v1578
        %v1580 = vrot.slane %v1579, 1
        %v1581 = vmax.f32 %v1579, %v1580
        %v1582 = vld [vmem:[#allocation8] sm:$0xff]
        %v1583 = vld [vmem:[#allocation8 + $0x8] sm:$0xff]
        %v1584 = vld [vmem:[#allocation8 + $0x10] sm:$0xff]
        %v1585 = vld [vmem:[#allocation8 + $0x18] sm:$0xff]
        %v1586 = vld [vmem:[#allocation8 + $0x20] sm:$0xff]
        %v1587 = vld [vmem:[#allocation8 + $0x28] sm:$0xff]
        %v1588 = vld [vmem:[#allocation8 + $0x30] sm:$0xff]
        %v1589 = vld [vmem:[#allocation8 + $0x38] sm:$0xff]
        %v1590 = vld [vmem:[#allocation8 + $0x40] sm:$0xff]
        %v1591 = vld [vmem:[#allocation8 + $0x48] sm:$0xff]
        %v1592 = vld [vmem:[#allocation8 + $0x50] sm:$0xff]
        %v1593 = vld [vmem:[#allocation8 + $0x58] sm:$0xff]
        %v1594 = vld [vmem:[#allocation8 + $0x60] sm:$0xff]
        %v1595 = vld [vmem:[#allocation8 + $0x68] sm:$0xff]
        %v1596 = vld [vmem:[#allocation8 + $0x70] sm:$0xff]
        %v1597 = vld [vmem:[#allocation8 + $0x78] sm:$0xff]
        %v1598 = vld [vmem:[#allocation8 + $0x80] sm:$0xff]
        %v1599 = vld [vmem:[#allocation8 + $0x88] sm:$0xff]
        %v1600 = vld [vmem:[#allocation8 + $0x90] sm:$0xff]
        %v1601 = vld [vmem:[#allocation8 + $0x98] sm:$0xff]
        %v1602 = vld [vmem:[#allocation8 + $0xa0] sm:$0xff]
        %v1603 = vld [vmem:[#allocation8 + $0xa8] sm:$0xff]
        %v1604 = vld [vmem:[#allocation8 + $0xb0] sm:$0xff]
        %v1605 = vld [vmem:[#allocation8 + $0xb8] sm:$0xff]
        %v1606 = vld [vmem:[#allocation8 + $0xc0] sm:$0xff]
        %v1607 = vld [vmem:[#allocation8 + $0xc8] sm:$0xff]
        %v1608 = vld [vmem:[#allocation8 + $0xd0] sm:$0xff]
        %v1609 = vld [vmem:[#allocation8 + $0xd8] sm:$0xff]
        %v1610 = vld [vmem:[#allocation8 + $0xe0] sm:$0xff]
        %v1611 = vld [vmem:[#allocation8 + $0xe8] sm:$0xff]
        %v1612 = vld [vmem:[#allocation8 + $0xf0] sm:$0xff]
        %v1613 = vld [vmem:[#allocation8 + $0xf8] sm:$0xff]
        %v1614 = vld [vmem:[#allocation8 + $0x100] sm:$0xff]
        %v1615 = vld [vmem:[#allocation8 + $0x108] sm:$0xff]
        %v1616 = vld [vmem:[#allocation8 + $0x110] sm:$0xff]
        %v1617 = vld [vmem:[#allocation8 + $0x118] sm:$0xff]
        %v1618 = vld [vmem:[#allocation8 + $0x120] sm:$0xff]
        %v1619 = vld [vmem:[#allocation8 + $0x128] sm:$0xff]
        %v1620 = vld [vmem:[#allocation8 + $0x130] sm:$0xff]
        %v1621 = vld [vmem:[#allocation8 + $0x138] sm:$0xff]
        %v1622 = vld [vmem:[#allocation8 + $0x140] sm:$0xff]
        %v1623 = vld [vmem:[#allocation8 + $0x148] sm:$0xff]
        %v1624 = vld [vmem:[#allocation8 + $0x150] sm:$0xff]
        %v1625 = vld [vmem:[#allocation8 + $0x158] sm:$0xff]
        %v1626 = vld [vmem:[#allocation8 + $0x160] sm:$0xff]
        %v1627 = vld [vmem:[#allocation8 + $0x168] sm:$0xff]
        %v1628 = vld [vmem:[#allocation8 + $0x170] sm:$0xff]
        %v1629 = vld [vmem:[#allocation8 + $0x178] sm:$0xff]
        %v1630 = vld [vmem:[#allocation8 + $0x180] sm:$0xff]
        %v1631 = vld [vmem:[#allocation8 + $0x188] sm:$0xff]
        %v1632 = vld [vmem:[#allocation8 + $0x190] sm:$0xff]
        %v1633 = vld [vmem:[#allocation8 + $0x198] sm:$0xff]
        %v1634 = vld [vmem:[#allocation8 + $0x1a0] sm:$0xff]
        %v1635 = vld [vmem:[#allocation8 + $0x1a8] sm:$0xff]
        %v1636 = vld [vmem:[#allocation8 + $0x1b0] sm:$0xff]
        %v1637 = vld [vmem:[#allocation8 + $0x1b8] sm:$0xff]
        %v1638 = vld [vmem:[#allocation8 + $0x1c0] sm:$0xff]
        %v1639 = vld [vmem:[#allocation8 + $0x1c8] sm:$0xff]
        %v1640 = vld [vmem:[#allocation8 + $0x1d0] sm:$0xff]
        %v1641 = vld [vmem:[#allocation8 + $0x1d8] sm:$0xff]
        %v1642 = vld [vmem:[#allocation8 + $0x1e0] sm:$0xff]
        %v1643 = vld [vmem:[#allocation8 + $0x1e8] sm:$0xff]
        %v1644 = vld [vmem:[#allocation8 + $0x1f0] sm:$0xff]
        %v1645 = vld [vmem:[#allocation8 + $0x1f8] sm:$0xff]
        %v1646 = vld [vmem:[%s5] sm:$0x1]
        %v1648 = vlaneseq
        %v1649 = vshrl.u32 %v1648, 7
        %v1650 = vsub.s32 0, %v1649
        %v1651 = vrot.slane %v1646, %v1650
        %vm1685 = vcmask 1041409
        %v1686 = vsel %vm1685, %v1392, %v1364
        %vm1687 = vcmask 1042434
        %v1688 = vsel %vm1687, %v1420, %v1686
        %vm1689 = vcmask 1043459
        %v1690 = vsel %vm1689, %v1448, %v1688
        %vm1691 = vcmask 1044484
        %v1692 = vsel %vm1691, %v1476, %v1690
        %vm1693 = vcmask 1045509
        %v1694 = vsel %vm1693, %v1504, %v1692
        %vm1695 = vcmask 1046534
        %v1696 = vsel %vm1695, %v1532, %v1694
        %vm1697 = vcmask 1047559
        %v1698 = vsel %vm1697, %v1560, %v1696
        %v1699 = vsel %vm1685, %v1399, %v1371
        %v1700 = vsel %vm1687, %v1427, %v1699
        %v1701 = vsel %vm1689, %v1455, %v1700
        %v1702 = vsel %vm1691, %v1483, %v1701
        %v1703 = vsel %vm1693, %v1511, %v1702
        %v1704 = vsel %vm1695, %v1539, %v1703
        %v1705 = vsel %vm1697, %v1567, %v1704
        %v1706 = vsel %vm1685, %v1406, %v1378
        %v1707 = vsel %vm1687, %v1434, %v1706
        %v1708 = vsel %vm1689, %v1462, %v1707
        %v1709 = vsel %vm1691, %v1490, %v1708
        %v1710 = vsel %vm1693, %v1518, %v1709
        %v1711 = vsel %vm1695, %v1546, %v1710
        %v1712 = vsel %vm1697, %v1574, %v1711
        %v1713 = vsel %vm1685, %v1413, %v1385
        %v1714 = vsel %vm1687, %v1441, %v1713
        %v1715 = vsel %vm1689, %v1469, %v1714
        %v1716 = vsel %vm1691, %v1497, %v1715
        %v1717 = vsel %vm1693, %v1525, %v1716
        %v1718 = vsel %vm1695, %v1553, %v1717
        %v1719 = vsel %vm1697, %v1581, %v1718
        %1724 = vmatprep.subr.mxu0 0.0
        %1725 = vmatpush1.msra.mxu0 %v1582
        %1726 = vmatprep.subr.mxu0 0.0
        %1727 = vmatpush1.msra.mxu0 %v1583
        %1728 = vmatprep.subr.mxu0 0.0
        %1729 = vmatpush1.msra.mxu0 %v1584
        %1730 = vmatprep.subr.mxu0 0.0
        %1731 = vmatpush1.msra.mxu0 %v1585
        %1732 = vmatprep.subr.mxu0 0.0
        %1733 = vmatpush1.msra.mxu0 %v1586
        %1734 = vmatprep.subr.mxu0 0.0
        %1735 = vmatpush1.msra.mxu0 %v1587
        %1736 = vmatprep.subr.mxu0 0.0
        %1737 = vmatpush1.msra.mxu0 %v1588
        %1738 = vmatprep.subr.mxu0 0.0
        %1739 = vmatpush1.msra.mxu0 %v1589
        %1740 = vmatprep.subr.mxu0 0.0
        %1741 = vmatpush1.msra.mxu0 %v1590
        %1742 = vmatprep.subr.mxu0 0.0
        %1743 = vmatpush1.msra.mxu0 %v1591
        %1744 = vmatprep.subr.mxu0 0.0
        %1745 = vmatpush1.msra.mxu0 %v1592
        %1746 = vmatprep.subr.mxu0 0.0
        %1747 = vmatpush1.msra.mxu0 %v1593
        %1748 = vmatprep.subr.mxu0 0.0
        %1749 = vmatpush1.msra.mxu0 %v1594
        %1750 = vmatprep.subr.mxu0 0.0
        %1751 = vmatpush1.msra.mxu0 %v1595
        %1752 = vmatprep.subr.mxu0 0.0
        %1753 = vmatpush1.msra.mxu0 %v1596
        %1754 = vmatprep.subr.mxu0 0.0
        %1755 = vmatpush1.msra.mxu0 %v1597
        %1756 = vmatprep.subr.mxu0 0.0
        %1757 = vmatpush1.msra.mxu0 %v1598
        %1758 = vmatprep.subr.mxu0 0.0
        %1759 = vmatpush1.msra.mxu0 %v1599
        %1760 = vmatprep.subr.mxu0 0.0
        %1761 = vmatpush1.msra.mxu0 %v1600
        %1762 = vmatprep.subr.mxu0 0.0
        %1763 = vmatpush1.msra.mxu0 %v1601
        %1764 = vmatprep.subr.mxu0 0.0
        %1765 = vmatpush1.msra.mxu0 %v1602
        %1766 = vmatprep.subr.mxu0 0.0
        %1767 = vmatpush1.msra.mxu0 %v1603
        %1768 = vmatprep.subr.mxu0 0.0
        %1769 = vmatpush1.msra.mxu0 %v1604
        %1770 = vmatprep.subr.mxu0 0.0
        %1771 = vmatpush1.msra.mxu0 %v1605
        %1772 = vmatprep.subr.mxu0 0.0
        %1773 = vmatpush1.msra.mxu0 %v1606
        %1774 = vmatprep.subr.mxu0 0.0
        %1775 = vmatpush1.msra.mxu0 %v1607
        %1776 = vmatprep.subr.mxu0 0.0
        %1777 = vmatpush1.msra.mxu0 %v1608
        %1778 = vmatprep.subr.mxu0 0.0
        %1779 = vmatpush1.msra.mxu0 %v1609
        %1780 = vmatprep.subr.mxu0 0.0
        %1781 = vmatpush1.msra.mxu0 %v1610
        %1782 = vmatprep.subr.mxu0 0.0
        %1783 = vmatpush1.msra.mxu0 %v1611
        %1784 = vmatprep.subr.mxu0 0.0
        %1785 = vmatpush1.msra.mxu0 %v1612
        %1786 = vmatprep.subr.mxu0 0.0
        %1787 = vmatpush1.msra.mxu0 %v1613
        %1788 = vmatprep.mubr.f32.mxu0 %v1705
        %1789 = vmatmul.mubr.f32.gmra.mrb[0].mxu0 %v1698
        %v1790 = vpop.f32.mrb[0].mxu0
        %v1791 = vadd.f32 %v1651, %v1790
        %v1792 = vpop.f32.mrb[0].mxu0
        %1793 = vdwg.mxu0
        %1794 = vmatprep.subr.mxu0 0.0
        %1795 = vmatpush1.msra.mxu0 %v1614
        %1796 = vmatprep.subr.mxu0 0.0
        %1797 = vmatpush1.msra.mxu0 %v1615
        %1798 = vmatprep.subr.mxu0 0.0
        %1799 = vmatpush1.msra.mxu0 %v1616
        %1800 = vmatprep.subr.mxu0 0.0
        %1801 = vmatpush1.msra.mxu0 %v1617
        %1802 = vmatprep.subr.mxu0 0.0
        %1803 = vmatpush1.msra.mxu0 %v1618
        %1804 = vmatprep.subr.mxu0 0.0
        %1805 = vmatpush1.msra.mxu0 %v1619
        %1806 = vmatprep.subr.mxu0 0.0
        %1807 = vmatpush1.msra.mxu0 %v1620
        %1808 = vmatprep.subr.mxu0 0.0
        %1809 = vmatpush1.msra.mxu0 %v1621
        %1810 = vmatprep.subr.mxu0 0.0
        %1811 = vmatpush1.msra.mxu0 %v1622
        %1812 = vmatprep.subr.mxu0 0.0
        %1813 = vmatpush1.msra.mxu0 %v1623
        %1814 = vmatprep.subr.mxu0 0.0
        %1815 = vmatpush1.msra.mxu0 %v1624
        %1816 = vmatprep.subr.mxu0 0.0
        %1817 = vmatpush1.msra.mxu0 %v1625
        %1818 = vmatprep.subr.mxu0 0.0
        %1819 = vmatpush1.msra.mxu0 %v1626
        %1820 = vmatprep.subr.mxu0 0.0
        %1821 = vmatpush1.msra.mxu0 %v1627
        %1822 = vmatprep.subr.mxu0 0.0
        %1823 = vmatpush1.msra.mxu0 %v1628
        %1824 = vmatprep.subr.mxu0 0.0
        %1825 = vmatpush1.msra.mxu0 %v1629
        %1826 = vmatprep.subr.mxu0 0.0
        %1827 = vmatpush1.msra.mxu0 %v1630
        %1828 = vmatprep.subr.mxu0 0.0
        %1829 = vmatpush1.msra.mxu0 %v1631
        %1830 = vmatprep.subr.mxu0 0.0
        %1831 = vmatpush1.msra.mxu0 %v1632
        %1832 = vmatprep.subr.mxu0 0.0
        %1833 = vmatpush1.msra.mxu0 %v1633
        %1834 = vmatprep.subr.mxu0 0.0
        %1835 = vmatpush1.msra.mxu0 %v1634
        %1836 = vmatprep.subr.mxu0 0.0
        %1837 = vmatpush1.msra.mxu0 %v1635
        %1838 = vmatprep.subr.mxu0 0.0
        %1839 = vmatpush1.msra.mxu0 %v1636
        %1840 = vmatprep.subr.mxu0 0.0
        %1841 = vmatpush1.msra.mxu0 %v1637
        %1842 = vmatprep.subr.mxu0 0.0
        %1843 = vmatpush1.msra.mxu0 %v1638
        %1844 = vmatprep.subr.mxu0 0.0
        %1845 = vmatpush1.msra.mxu0 %v1639
        %1846 = vmatprep.subr.mxu0 0.0
        %1847 = vmatpush1.msra.mxu0 %v1640
        %1848 = vmatprep.subr.mxu0 0.0
        %1849 = vmatpush1.msra.mxu0 %v1641
        %1850 = vmatprep.subr.mxu0 0.0
        %1851 = vmatpush1.msra.mxu0 %v1642
        %1852 = vmatprep.subr.mxu0 0.0
        %1853 = vmatpush1.msra.mxu0 %v1643
        %1854 = vmatprep.subr.mxu0 0.0
        %1855 = vmatpush1.msra.mxu0 %v1644
        %1856 = vmatprep.subr.mxu0 0.0
        %1857 = vmatpush1.msra.mxu0 %v1645
        %1858 = vmatprep.mubr.f32.mxu0 %v1719
        %1859 = vmatmul.mubr.f32.gmra.mrb[0].mxu0 %v1712
        %v1860 = vpop.f32.mrb[0].mxu0
        %v1861 = vadd.f32 %v1791, %v1860
        %v1862 = vpop.f32.mrb[0].mxu0
        %1863 = vdwg.mxu0
        %1864 = vst [vmem:[%s314] sm:$0xff] %v1861
        %s1865 = sand.u32 %s164, 1
        %s1866 = scalar_lea.sflag [#allocation4], %s1865
        %s1867 = sand.u32 %s164, 1
        %s1868 = smul.addr %s1867, 8
        %s1869 = scalar_lea.vmem [#allocation10], %s1868
        // Predicated region
        $region61: #{tpu_custom_call.1} parent=43 // pred_check
          %p1870 = pneg %p174
        $region62: #{tpu_custom_call.1} parent=43 // pred_check_branch
          %1872 = sbr.rel (%p1870) target = $region64
        $region63: #{tpu_custom_call.1} parent=43 // pred_region
          %s1874 = ssub.s32 128, 128
          %1875 = vsyncadd %s1866, %s1874
          %s1876 = smul.addr %s25, 128
          %s1877 = scalar_lea.hbm %s6, %s1876
          %s1879 = sshll.u32 %s1869, 4
          %s1880 = int_to_ptr.vmem [resolvable:$true] %s1879
          %1882 = dma.vmem_to_hbm [thread:$0]  %s1880, 128, %s1877, %s1866
        $region64: #{tpu_custom_call.1} parent=43 // pred_fallthru
          _
      $region44: #{tpu_custom_call.1} parent=5 // pred_fallthru
        _
      %p1883 = scmp.le.s32.totalorder 2, %s20
      // Predicated region
      $region65: #{tpu_custom_call.1} parent=5 // pred_check
        %p1884 = pneg %p1883
      $region66: #{tpu_custom_call.1} parent=5 // pred_check_branch
        %1886 = sbr.rel (%p1884) target = $region68
      $region67: #{tpu_custom_call.1} parent=5 // pred_region
        %s1887 = ssub.s32 %s20, 2
        // Predicated region
        $region69: #{tpu_custom_call.1} parent=67 // pred_check
          %p1888 = pneg %p180
        $region70: #{tpu_custom_call.1} parent=67 // pred_check_branch
          %1890 = sbr.rel (%p1888) target = $region72
        $region71: #{tpu_custom_call.1} parent=67 // pred_region
          %s1891 = sand.u32 %s165, 1
          %s1892 = scalar_lea.sflag [#allocation4], %s1891
          %s1893 = sand.u32 %s165, 1
          %s1894 = smul.addr %s1893, 8
          %s1895 = scalar_lea.vmem [#allocation10], %s1894
          %1896 = dma.done %s1892, 128
        $region72: #{tpu_custom_call.1} parent=67 // pred_fallthru
          _
      $region68: #{tpu_custom_call.1} parent=5 // pred_fallthru
        _
    $region6: #{tpu_custom_call.1} parent=1 // loop_footer
      %s24 = sadd.s32 1, %s20
    $region7: #{tpu_custom_call.1} parent=1 // loop_footer_branch
      %19 = sbr.rel target = $region3
    $region8: #{tpu_custom_call.1} parent=1 // loop_exit
      _
    %1897 = vsyncpa [#allocation3], 1
    %s1898 = scalar_lea.sflag [#allocation3], 1
    %1899 = vsyncpa %s1898, 1
    %1900 = vsyncpa [#allocation6], 1
    %1901 = vsyncpa [#allocation9], 1
    %1902 = vsyncpa [#allocation4], 1
    %s1903 = scalar_lea.sflag [#allocation4], 1
    %1904 = vsyncpa %s1903, 1

</llo_original>
